<compile_context>
chip_gen: v7x
topology: tpu7x:2x2x1
jax: 0.10.0
libtpu: 0.0.40
codegen_flags: <defaults>
</compile_context>

<pallas_src>
import functools

import jax
import jax.numpy as jnp
import numpy as np
from jax import lax
from jax.experimental import pallas as pl
from jax.experimental.pallas import tpu as pltpu


def _conv_stats_kernel(x_ref, w_ref, m_ref, y_ref, ssum_ref, ssq_ref,
                       *, KH, KW, Wp, L):
    """One (image, row-tile) step: 3x3 conv as tap dots + partial BN statistics.

    x_ref   : (1, Cin, T)        flattened padded row-tile (bf16), T = (TH+KH-1)*Wp
    w_ref   : (KH*KW, Cout, Cin) conv weights, one small matrix per tap (bf16)
    m_ref   : (1, L)             f32 {0,1} mask of valid (non width-pad) columns
    y_ref   : (1, Cout, L)       f32 conv output (channels on sublanes, spatial on lanes)
    ssum_ref: (1, Cout, 1)       f32 per-tile per-channel sum
    ssq_ref : (1, Cout, 1)       f32 per-tile per-channel sum of squares
    """
    cout = w_ref.shape[1]
    acc = jnp.zeros((cout, L), jnp.float32)
    # 3x3 conv: each tap is a static lane-offset slice of the flattened padded tile.
    for t in range(KH * KW):
        kh, kw = divmod(t, KW)
        d = kh * Wp + kw
        acc = acc + jnp.dot(w_ref[t], x_ref[0, :, d:d + L],
                            preferred_element_type=jnp.float32)
    y_ref[0] = acc

    # Partial BN statistics (width-pad garbage columns masked out).
    am = acc * m_ref[...]
    ssum_ref[0] = jnp.sum(am, axis=1, keepdims=True)
    ssq_ref[0] = jnp.sum(am * acc, axis=1, keepdims=True)


def _bn_relu_kernel(y_ref, sc_ref, sh_ref, o_ref):
    """Per tile: y * scale + shift, then ReLU (scale/shift are per-channel (Cout, 1))."""
    o_ref[0] = jnp.maximum(y_ref[0] * sc_ref[...] + sh_ref[...], 0.0)


def _choose_row_tile(h_out, w_p, cin, cout, kh):
    """Largest divisor of h_out whose per-step working set stays well inside VMEM."""
    budget = 2 * 1024 * 1024          # per-block target; Pallas double-buffers blocks
    best = 1
    for cand in range(1, h_out + 1):
        if h_out % cand:
            continue
        in_bytes = cin * (cand + kh - 1) * w_p * 2        # bf16 input tile
        y_bytes = cout * cand * w_p * 4                    # f32 conv-output block
        if in_bytes + 2 * y_bytes <= budget:
            best = cand
    return best


@functools.partial(jax.jit, static_argnums=(4, 5))
def _conv_block_impl(x_nchw, w_oihw, gamma, beta, padding, eps):
    N, Cin, H, W = x_nchw.shape
    Cout, _, KH, KW = w_oihw.shape

    Hp, Wp = H + 2 * padding, W + 2 * padding
    H_out, W_out = Hp - KH + 1, Wp - KW + 1

    TH = _choose_row_tile(H_out, Wp, Cin, Cout, KH)
    n_h = H_out // TH
    NT = N * n_h
    T = (TH + KH - 1) * Wp            # flattened padded rows per tile
    L = TH * Wp - (KW - 1)            # output columns per tile (incl. width-pad cols)

    # ---- XLA glue: pad once, cut row tiles (halo-only duplication), flatten ----
    xp = jnp.pad(x_nchw.astype(jnp.bfloat16),
                 ((0, 0), (0, 0), (padding, padding), (padding, padding)))
    tiles = [xp[:, :, t * TH: t * TH + TH + KH - 1, :] for t in range(n_h)]
    xh = jnp.stack(tiles, axis=1).reshape(NT, Cin, T)

    # (Cout, Cin, KH, KW) -> (KH*KW, Cout, Cin): one small weight matrix per tap.
    w3 = jnp.transpose(w_oihw, (2, 3, 0, 1)).reshape(KH * KW, Cout, Cin)
    w3 = w3.astype(jnp.bfloat16)

    # Valid-column mask inside a flattened row-tile (excludes width padding).
    mask = ((jnp.arange(L) % Wp) < W_out).astype(jnp.float32).reshape(1, L)

    # ---- pass 1: conv + per-tile per-channel partial statistics ----
    y_conv, ssum, ssq = pl.pallas_call(
        functools.partial(_conv_stats_kernel, KH=KH, KW=KW, Wp=Wp, L=L),
        grid=(NT,),
        in_specs=[
            pl.BlockSpec((1, Cin, T), lambda i: (i, 0, 0)),
            pl.BlockSpec((KH * KW, Cout, Cin), lambda i: (0, 0, 0)),
            pl.BlockSpec((1, L), lambda i: (0, 0)),
        ],
        out_specs=(
            pl.BlockSpec((1, Cout, L), lambda i: (i, 0, 0)),
            pl.BlockSpec((1, Cout, 1), lambda i: (i, 0, 0)),
            pl.BlockSpec((1, Cout, 1), lambda i: (i, 0, 0)),
        ),
        out_shape=(
            jax.ShapeDtypeStruct((NT, Cout, L), jnp.float32),
            jax.ShapeDtypeStruct((NT, Cout, 1), jnp.float32),
            jax.ShapeDtypeStruct((NT, Cout, 1), jnp.float32),
        ),
        compiler_params=pltpu.CompilerParams(dimension_semantics=("parallel",)),
    )(xh, w3, mask)

    # ---- tiny per-channel reduction (XLA): fold training-mode BN into scale/shift.
    # (nn.BatchNorm2d's running-stat buffer update is a side effect that does not
    #  influence the forward output; it is not emitted here.)
    count = float(N * H_out * W_out)
    sum_c = jnp.sum(ssum, axis=0)[:, 0]
    sq_c = jnp.sum(ssq, axis=0)[:, 0]
    mean = sum_c / count
    var = jnp.maximum(sq_c / count - mean * mean, 0.0)      # biased batch variance
    scale = gamma.astype(jnp.float32) * lax.rsqrt(var + eps)
    shift = beta.astype(jnp.float32) - mean * scale
    scale = scale.reshape(Cout, 1)
    shift = shift.reshape(Cout, 1)

    # ---- pass 2: y * scale + shift, ReLU ----
    out_flat = pl.pallas_call(
        _bn_relu_kernel,
        grid=(NT,),
        in_specs=[
            pl.BlockSpec((1, Cout, L), lambda i: (i, 0, 0)),
            pl.BlockSpec((Cout, 1), lambda i: (0, 0)),
            pl.BlockSpec((Cout, 1), lambda i: (0, 0)),
        ],
        out_specs=pl.BlockSpec((1, Cout, L), lambda i: (i, 0, 0)),
        out_shape=jax.ShapeDtypeStruct((NT, Cout, L), jnp.float32),
        compiler_params=pltpu.CompilerParams(dimension_semantics=("parallel",)),
    )(y_conv, scale, shift)

    # ---- drop the width-pad columns, return NCHW (N, Cout, H_out, W_out) ----
    out_p = jnp.pad(out_flat, ((0, 0), (0, 0), (0, TH * Wp - L)))
    out = out_p.reshape(N, n_h, Cout, TH, Wp)[:, :, :, :, :W_out]
    return jnp.transpose(out, (0, 2, 1, 3, 4)).reshape(N, Cout, H_out, W_out)


def conv_block(x_nchw, w_oihw, gamma, beta, *, padding=1, eps=1e-5):
    """Pallas ConvBlock forward. x: (N, Cin, H, W) NCHW, w: (Cout, Cin, KH, KW)."""
    return _conv_block_impl(x_nchw, w_oihw, gamma, beta, int(padding), float(eps))


def conv_block_reference(x_nchw, w_oihw, gamma, beta, *, padding=1, eps=1e-5):
    """Pure-JAX (f32) reference for verification."""
    y = lax.conv_general_dilated(
        x_nchw.astype(jnp.float32), w_oihw.astype(jnp.float32),
        window_strides=(1, 1), padding=[(padding, padding), (padding, padding)],
        dimension_numbers=("NCHW", "OIHW", "NCHW"))
    mean = jnp.mean(y, axis=(0, 2, 3), keepdims=True)
    var = jnp.mean(jnp.square(y - mean), axis=(0, 2, 3), keepdims=True)
    yhat = (y - mean) * lax.rsqrt(var + eps)
    yhat = yhat * gamma.reshape(1, -1, 1, 1) + beta.reshape(1, -1, 1, 1)
    return jnp.maximum(yhat, 0.0)


if __name__ == "__main__":
    key = jax.random.PRNGKey(0)
    k_x, k_w, k_g, k_b = jax.random.split(key, 4)

    N, Cin, Cout, H, W = 2, 4, 8, 16, 16
    KH = KW = 3

    x = jax.random.normal(k_x, (N, Cin, H, W), dtype=jnp.float32)
    # Deterministic synthetic parameters (Conv2d weight; BN affine gamma/beta).
    w = jax.random.normal(k_w, (Cout, Cin, KH, KW), dtype=jnp.float32) * 0.1
    gamma = 1.0 + 0.1 * jax.random.normal(k_g, (Cout,), dtype=jnp.float32)
    beta = 0.1 * jax.random.normal(k_b, (Cout,), dtype=jnp.float32)

    out = jax.block_until_ready(conv_block(x, w, gamma, beta))
    ref = jax.block_until_ready(conv_block_reference(x, w, gamma, beta))

    # bf16 MXU operands (f32 accumulation) vs. an f32 reference: tolerance loosened
    # slightly beyond 1e-3, as anticipated in the performance review.
    np.testing.assert_allclose(np.asarray(out), np.asarray(ref), rtol=2e-2, atol=2e-2)

    print("KERNEL_OK")
</pallas_src>

<mosaic_0001>
module attributes {stable_mosaic.version = 11 : i64} {
  func.func @_bn_relu_kernel(%arg0: i32, %arg1: memref<1x8x286xf32, #tpu.memory_space<vmem>>, %arg2: memref<8x1xf32, #tpu.memory_space<vmem>>, %arg3: memref<8x1xf32, #tpu.memory_space<vmem>>, %arg4: memref<1x8x286xf32, #tpu.memory_space<vmem>>) attributes {dimension_semantics = [#tpu.dimension_semantics<parallel>], iteration_bounds = array<i64: 2>, scalar_prefetch = 0 : i64, scratch_operands = 0 : i64, tpu.core_type = #tpu.core_type<tc>, window_params = [{transform_indices = @transform_0, window_bounds = array<i64: 1, 8, 286>}, {pipeline_mode = #tpu.pipeline_mode<synchronous>, transform_indices = @transform_1, window_bounds = array<i64: 8, 1>}, {pipeline_mode = #tpu.pipeline_mode<synchronous>, transform_indices = @transform_2, window_bounds = array<i64: 8, 1>}, {transform_indices = @transform_3, window_bounds = array<i64: 1, 8, 286>}]} {
    %c0 = arith.constant 0 : index
    %c0_0 = arith.constant 0 : index
    %c0_1 = arith.constant 0 : index
    %0 = vector.load %arg1[%c0, %c0_0, %c0_1] : memref<1x8x286xf32, #tpu.memory_space<vmem>>, vector<1x8x286xf32>
    %1 = vector.shape_cast %0 : vector<1x8x286xf32> to vector<8x286xf32>
    %c0_2 = arith.constant 0 : index
    %c0_3 = arith.constant 0 : index
    %2 = vector.load %arg2[%c0_2, %c0_3] : memref<8x1xf32, #tpu.memory_space<vmem>>, vector<8x1xf32>
    %3 = vector.broadcast %2 : vector<8x1xf32> to vector<8x286xf32>
    %4 = arith.mulf %1, %3 : vector<8x286xf32>
    %c0_4 = arith.constant 0 : index
    %c0_5 = arith.constant 0 : index
    %5 = vector.load %arg3[%c0_4, %c0_5] : memref<8x1xf32, #tpu.memory_space<vmem>>, vector<8x1xf32>
    %6 = vector.broadcast %5 : vector<8x1xf32> to vector<8x286xf32>
    %7 = arith.addf %4, %6 : vector<8x286xf32>
    %cst = arith.constant 0.000000e+00 : f32
    %8 = vector.broadcast %cst : f32 to vector<8x286xf32>
    %9 = arith.maximumf %7, %8 : vector<8x286xf32>
    %c0_6 = arith.constant 0 : index
    %c0_7 = arith.constant 0 : index
    %c0_8 = arith.constant 0 : index
    %10 = vector.load %arg4[%c0_6, %c0_7, %c0_8] : memref<1x8x286xf32, #tpu.memory_space<vmem>>, vector<1x8x286xf32>
    %11 = vector.shape_cast %10 : vector<1x8x286xf32> to vector<8x286xf32>
    %12 = vector.shape_cast %9 : vector<8x286xf32> to vector<1x8x286xf32>
    tpu.vector_store %arg4[%c0_6, %c0_7, %c0_8], %12 {strides = array<i32>} : memref<1x8x286xf32, #tpu.memory_space<vmem>>, vector<1x8x286xf32>,
    return
  }
  func.func @transform_0(%arg0: i32) -> (i32, i32, i32) {
    %c0_i32 = arith.constant 0 : i32
    %c0_i32_0 = arith.constant 0 : i32
    %c0_i32_1 = arith.constant 0 : i32
    return %arg0, %c0_i32, %c0_i32_0 : i32, i32, i32
  }
  func.func @transform_1(%arg0: i32) -> (i32, i32) {
    %c0_i32 = arith.constant 0 : i32
    %c0_i32_0 = arith.constant 0 : i32
    %c0_i32_1 = arith.constant 0 : i32
    return %c0_i32, %c0_i32_0 : i32, i32
  }
  func.func @transform_2(%arg0: i32) -> (i32, i32) {
    %c0_i32 = arith.constant 0 : i32
    %c0_i32_0 = arith.constant 0 : i32
    %c0_i32_1 = arith.constant 0 : i32
    return %c0_i32, %c0_i32_0 : i32, i32
  }
  func.func @transform_3(%arg0: i32) -> (i32, i32, i32) {
    %c0_i32 = arith.constant 0 : i32
    %c0_i32_0 = arith.constant 0 : i32
    %c0_i32_1 = arith.constant 0 : i32
    return %arg0, %c0_i32, %c0_i32_0 : i32, i32, i32
  }
}

module attributes {stable_mosaic.version = 11 : i64} {
  func.func @_conv_stats_kernel(%arg0: i32, %arg1: memref<1x4x324xbf16, #tpu.memory_space<vmem>>, %arg2: memref<9x8x4xbf16, #tpu.memory_space<vmem>>, %arg3: memref<1x286xf32, #tpu.memory_space<vmem>>, %arg4: memref<1x8x286xf32, #tpu.memory_space<vmem>>, %arg5: memref<1x8x1xf32, #tpu.memory_space<vmem>>, %arg6: memref<1x8x1xf32, #tpu.memory_space<vmem>>) attributes {dimension_semantics = [#tpu.dimension_semantics<parallel>], iteration_bounds = array<i64: 2>, scalar_prefetch = 0 : i64, scratch_operands = 0 : i64, tpu.core_type = #tpu.core_type<tc>, window_params = [{transform_indices = @transform_0, window_bounds = array<i64: 1, 4, 324>}, {pipeline_mode = #tpu.pipeline_mode<synchronous>, transform_indices = @transform_1, window_bounds = array<i64: 9, 8, 4>}, {pipeline_mode = #tpu.pipeline_mode<synchronous>, transform_indices = @transform_2, window_bounds = array<i64: 1, 286>}, {transform_indices = @transform_3, window_bounds = array<i64: 1, 8, 286>}, {transform_indices = @transform_4, window_bounds = array<i64: 1, 8, 1>}, {transform_indices = @transform_5, window_bounds = array<i64: 1, 8, 1>}]} {
    %cst = arith.constant 0.000000e+00 : f32
    %0 = vector.broadcast %cst : f32 to vector<8x286xf32>
    %c0 = arith.constant 0 : index
    %c0_0 = arith.constant 0 : index
    %c0_1 = arith.constant 0 : index
    %1 = vector.load %arg2[%c0, %c0_0, %c0_1] : memref<9x8x4xbf16, #tpu.memory_space<vmem>>, vector<1x8x4xbf16>
    %2 = vector.shape_cast %1 : vector<1x8x4xbf16> to vector<8x4xbf16>
    %c0_2 = arith.constant 0 : index
    %c0_3 = arith.constant 0 : index
    %c0_4 = arith.constant 0 : index
    %3 = vector.load %arg1[%c0_2, %c0_3, %c0_4] : memref<1x4x324xbf16, #tpu.memory_space<vmem>>, vector<1x4x286xbf16>
    %4 = vector.shape_cast %3 : vector<1x4x286xbf16> to vector<4x286xbf16>
    %cst_5 = arith.constant dense<0.000000e+00> : vector<8x286xf32>
    %5 = tpu.matmul %2, %4, %cst_5 {dimension_numbers = #tpu.dot_dimension_numbers<[1], [0], [0], [1], [0, 0, 1, 1], [], []>} : vector<8x4xbf16>, vector<4x286xbf16>, vector<8x286xf32> -> vector<8x286xf32>
    %6 = arith.addf %0, %5 : vector<8x286xf32>
    %c1 = arith.constant 1 : index
    %c0_6 = arith.constant 0 : index
    %c0_7 = arith.constant 0 : index
    %7 = vector.load %arg2[%c1, %c0_6, %c0_7] : memref<9x8x4xbf16, #tpu.memory_space<vmem>>, vector<1x8x4xbf16>
    %8 = vector.shape_cast %7 : vector<1x8x4xbf16> to vector<8x4xbf16>
    %c0_8 = arith.constant 0 : index
    %c0_9 = arith.constant 0 : index
    %c1_10 = arith.constant 1 : index
    %9 = vector.load %arg1[%c0_8, %c0_9, %c1_10] : memref<1x4x324xbf16, #tpu.memory_space<vmem>>, vector<1x4x286xbf16>
    %10 = vector.shape_cast %9 : vector<1x4x286xbf16> to vector<4x286xbf16>
    %cst_11 = arith.constant dense<0.000000e+00> : vector<8x286xf32>
    %11 = tpu.matmul %8, %10, %cst_11 {dimension_numbers = #tpu.dot_dimension_numbers<[1], [0], [0], [1], [0, 0, 1, 1], [], []>} : vector<8x4xbf16>, vector<4x286xbf16>, vector<8x286xf32> -> vector<8x286xf32>
    %12 = arith.addf %6, %11 : vector<8x286xf32>
    %c2 = arith.constant 2 : index
    %c0_12 = arith.constant 0 : index
    %c0_13 = arith.constant 0 : index
    %13 = vector.load %arg2[%c2, %c0_12, %c0_13] : memref<9x8x4xbf16, #tpu.memory_space<vmem>>, vector<1x8x4xbf16>
    %14 = vector.shape_cast %13 : vector<1x8x4xbf16> to vector<8x4xbf16>
    %c0_14 = arith.constant 0 : index
    %c0_15 = arith.constant 0 : index
    %c2_16 = arith.constant 2 : index
    %15 = vector.load %arg1[%c0_14, %c0_15, %c2_16] : memref<1x4x324xbf16, #tpu.memory_space<vmem>>, vector<1x4x286xbf16>
    %16 = vector.shape_cast %15 : vector<1x4x286xbf16> to vector<4x286xbf16>
    %cst_17 = arith.constant dense<0.000000e+00> : vector<8x286xf32>
    %17 = tpu.matmul %14, %16, %cst_17 {dimension_numbers = #tpu.dot_dimension_numbers<[1], [0], [0], [1], [0, 0, 1, 1], [], []>} : vector<8x4xbf16>, vector<4x286xbf16>, vector<8x286xf32> -> vector<8x286xf32>
    %18 = arith.addf %12, %17 : vector<8x286xf32>
    %c3 = arith.constant 3 : index
    %c0_18 = arith.constant 0 : index
    %c0_19 = arith.constant 0 : index
    %19 = vector.load %arg2[%c3, %c0_18, %c0_19] : memref<9x8x4xbf16, #tpu.memory_space<vmem>>, vector<1x8x4xbf16>
    %20 = vector.shape_cast %19 : vector<1x8x4xbf16> to vector<8x4xbf16>
    %c0_20 = arith.constant 0 : index
    %c0_21 = arith.constant 0 : index
    %c18 = arith.constant 18 : index
    %21 = vector.load %arg1[%c0_20, %c0_21, %c18] : memref<1x4x324xbf16, #tpu.memory_space<vmem>>, vector<1x4x286xbf16>
    %22 = vector.shape_cast %21 : vector<1x4x286xbf16> to vector<4x286xbf16>
    %cst_22 = arith.constant dense<0.000000e+00> : vector<8x286xf32>
    %23 = tpu.matmul %20, %22, %cst_22 {dimension_numbers = #tpu.dot_dimension_numbers<[1], [0], [0], [1], [0, 0, 1, 1], [], []>} : vector<8x4xbf16>, vector<4x286xbf16>, vector<8x286xf32> -> vector<8x286xf32>
    %24 = arith.addf %18, %23 : vector<8x286xf32>
    %c4 = arith.constant 4 : index
    %c0_23 = arith.constant 0 : index
    %c0_24 = arith.constant 0 : index
    %25 = vector.load %arg2[%c4, %c0_23, %c0_24] : memref<9x8x4xbf16, #tpu.memory_space<vmem>>, vector<1x8x4xbf16>
    %26 = vector.shape_cast %25 : vector<1x8x4xbf16> to vector<8x4xbf16>
    %c0_25 = arith.constant 0 : index
    %c0_26 = arith.constant 0 : index
    %c19 = arith.constant 19 : index
    %27 = vector.load %arg1[%c0_25, %c0_26, %c19] : memref<1x4x324xbf16, #tpu.memory_space<vmem>>, vector<1x4x286xbf16>
    %28 = vector.shape_cast %27 : vector<1x4x286xbf16> to vector<4x286xbf16>
    %cst_27 = arith.constant dense<0.000000e+00> : vector<8x286xf32>
    %29 = tpu.matmul %26, %28, %cst_27 {dimension_numbers = #tpu.dot_dimension_numbers<[1], [0], [0], [1], [0, 0, 1, 1], [], []>} : vector<8x4xbf16>, vector<4x286xbf16>, vector<8x286xf32> -> vector<8x286xf32>
    %30 = arith.addf %24, %29 : vector<8x286xf32>
    %c5 = arith.constant 5 : index
    %c0_28 = arith.constant 0 : index
    %c0_29 = arith.constant 0 : index
    %31 = vector.load %arg2[%c5, %c0_28, %c0_29] : memref<9x8x4xbf16, #tpu.memory_space<vmem>>, vector<1x8x4xbf16>
    %32 = vector.shape_cast %31 : vector<1x8x4xbf16> to vector<8x4xbf16>
    %c0_30 = arith.constant 0 : index
    %c0_31 = arith.constant 0 : index
    %c20 = arith.constant 20 : index
    %33 = vector.load %arg1[%c0_30, %c0_31, %c20] : memref<1x4x324xbf16, #tpu.memory_space<vmem>>, vector<1x4x286xbf16>
    %34 = vector.shape_cast %33 : vector<1x4x286xbf16> to vector<4x286xbf16>
    %cst_32 = arith.constant dense<0.000000e+00> : vector<8x286xf32>
    %35 = tpu.matmul %32, %34, %cst_32 {dimension_numbers = #tpu.dot_dimension_numbers<[1], [0], [0], [1], [0, 0, 1, 1], [], []>} : vector<8x4xbf16>, vector<4x286xbf16>, vector<8x286xf32> -> vector<8x286xf32>
    %36 = arith.addf %30, %35 : vector<8x286xf32>
    %c6 = arith.constant 6 : index
    %c0_33 = arith.constant 0 : index
    %c0_34 = arith.constant 0 : index
    %37 = vector.load %arg2[%c6, %c0_33, %c0_34] : memref<9x8x4xbf16, #tpu.memory_space<vmem>>, vector<1x8x4xbf16>
    %38 = vector.shape_cast %37 : vector<1x8x4xbf16> to vector<8x4xbf16>
    %c0_35 = arith.constant 0 : index
    %c0_36 = arith.constant 0 : index
    %c36 = arith.constant 36 : index
    %39 = vector.load %arg1[%c0_35, %c0_36, %c36] : memref<1x4x324xbf16, #tpu.memory_space<vmem>>, vector<1x4x286xbf16>
    %40 = vector.shape_cast %39 : vector<1x4x286xbf16> to vector<4x286xbf16>
    %cst_37 = arith.constant dense<0.000000e+00> : vector<8x286xf32>
    %41 = tpu.matmul %38, %40, %cst_37 {dimension_numbers = #tpu.dot_dimension_numbers<[1], [0], [0], [1], [0, 0, 1, 1], [], []>} : vector<8x4xbf16>, vector<4x286xbf16>, vector<8x286xf32> -> vector<8x286xf32>
    %42 = arith.addf %36, %41 : vector<8x286xf32>
    %c7 = arith.constant 7 : index
    %c0_38 = arith.constant 0 : index
    %c0_39 = arith.constant 0 : index
    %43 = vector.load %arg2[%c7, %c0_38, %c0_39] : memref<9x8x4xbf16, #tpu.memory_space<vmem>>, vector<1x8x4xbf16>
    %44 = vector.shape_cast %43 : vector<1x8x4xbf16> to vector<8x4xbf16>
    %c0_40 = arith.constant 0 : index
    %c0_41 = arith.constant 0 : index
    %c37 = arith.constant 37 : index
    %45 = vector.load %arg1[%c0_40, %c0_41, %c37] : memref<1x4x324xbf16, #tpu.memory_space<vmem>>, vector<1x4x286xbf16>
    %46 = vector.shape_cast %45 : vector<1x4x286xbf16> to vector<4x286xbf16>
    %cst_42 = arith.constant dense<0.000000e+00> : vector<8x286xf32>
    %47 = tpu.matmul %44, %46, %cst_42 {dimension_numbers = #tpu.dot_dimension_numbers<[1], [0], [0], [1], [0, 0, 1, 1], [], []>} : vector<8x4xbf16>, vector<4x286xbf16>, vector<8x286xf32> -> vector<8x286xf32>
    %48 = arith.addf %42, %47 : vector<8x286xf32>
    %c8 = arith.constant 8 : index
    %c0_43 = arith.constant 0 : index
    %c0_44 = arith.constant 0 : index
    %49 = vector.load %arg2[%c8, %c0_43, %c0_44] : memref<9x8x4xbf16, #tpu.memory_space<vmem>>, vector<1x8x4xbf16>
    %50 = vector.shape_cast %49 : vector<1x8x4xbf16> to vector<8x4xbf16>
    %c0_45 = arith.constant 0 : index
    %c0_46 = arith.constant 0 : index
    %c38 = arith.constant 38 : index
    %51 = vector.load %arg1[%c0_45, %c0_46, %c38] : memref<1x4x324xbf16, #tpu.memory_space<vmem>>, vector<1x4x286xbf16>
    %52 = vector.shape_cast %51 : vector<1x4x286xbf16> to vector<4x286xbf16>
    %cst_47 = arith.constant dense<0.000000e+00> : vector<8x286xf32>
    %53 = tpu.matmul %50, %52, %cst_47 {dimension_numbers = #tpu.dot_dimension_numbers<[1], [0], [0], [1], [0, 0, 1, 1], [], []>} : vector<8x4xbf16>, vector<4x286xbf16>, vector<8x286xf32> -> vector<8x286xf32>
    %54 = arith.addf %48, %53 : vector<8x286xf32>
    %c0_48 = arith.constant 0 : index
    %c0_49 = arith.constant 0 : index
    %c0_50 = arith.constant 0 : index
    %55 = vector.load %arg4[%c0_48, %c0_49, %c0_50] : memref<1x8x286xf32, #tpu.memory_space<vmem>>, vector<1x8x286xf32>
    %56 = vector.shape_cast %55 : vector<1x8x286xf32> to vector<8x286xf32>
    %57 = vector.shape_cast %54 : vector<8x286xf32> to vector<1x8x286xf32>
    tpu.vector_store %arg4[%c0_48, %c0_49, %c0_50], %57 {strides = array<i32>} : memref<1x8x286xf32, #tpu.memory_space<vmem>>, vector<1x8x286xf32>,
    %c0_51 = arith.constant 0 : index
    %c0_52 = arith.constant 0 : index
    %58 = vector.load %arg3[%c0_51, %c0_52] : memref<1x286xf32, #tpu.memory_space<vmem>>, vector<1x286xf32>
    %59 = vector.broadcast %58 : vector<1x286xf32> to vector<8x286xf32>
    %60 = arith.mulf %54, %59 : vector<8x286xf32>
    %cst_53 = arith.constant dense<0.000000e+00> : vector<8xf32>
    %61 = vector.multi_reduction <add>, %60, %cst_53 [1] : vector<8x286xf32> to vector<8xf32>
    %62 = vector.shape_cast %61 : vector<8xf32> to vector<8x1xf32>
    %c0_54 = arith.constant 0 : index
    %c0_55 = arith.constant 0 : index
    %c0_56 = arith.constant 0 : index
    %63 = vector.load %arg5[%c0_54, %c0_55, %c0_56] : memref<1x8x1xf32, #tpu.memory_space<vmem>>, vector<1x8x1xf32>
    %64 = vector.shape_cast %63 : vector<1x8x1xf32> to vector<8x1xf32>
    %65 = vector.shape_cast %62 : vector<8x1xf32> to vector<1x8x1xf32>
    tpu.vector_store %arg5[%c0_54, %c0_55, %c0_56], %65 {strides = array<i32>} : memref<1x8x1xf32, #tpu.memory_space<vmem>>, vector<1x8x1xf32>,
    %66 = arith.mulf %60, %54 : vector<8x286xf32>
    %cst_57 = arith.constant dense<0.000000e+00> : vector<8xf32>
    %67 = vector.multi_reduction <add>, %66, %cst_57 [1] : vector<8x286xf32> to vector<8xf32>
    %68 = vector.shape_cast %67 : vector<8xf32> to vector<8x1xf32>
    %c0_58 = arith.constant 0 : index
    %c0_59 = arith.constant 0 : index
    %c0_60 = arith.constant 0 : index
    %69 = vector.load %arg6[%c0_58, %c0_59, %c0_60] : memref<1x8x1xf32, #tpu.memory_space<vmem>>, vector<1x8x1xf32>
    %70 = vector.shape_cast %69 : vector<1x8x1xf32> to vector<8x1xf32>
    %71 = vector.shape_cast %68 : vector<8x1xf32> to vector<1x8x1xf32>
    tpu.vector_store %arg6[%c0_58, %c0_59, %c0_60], %71 {strides = array<i32>} : memref<1x8x1xf32, #tpu.memory_space<vmem>>, vector<1x8x1xf32>,
    return
  }
  func.func @transform_0(%arg0: i32) -> (i32, i32, i32) {
    %c0_i32 = arith.constant 0 : i32
    %c0_i32_0 = arith.constant 0 : i32
    %c0_i32_1 = arith.constant 0 : i32
    return %arg0, %c0_i32, %c0_i32_0 : i32, i32, i32
  }
  func.func @transform_1(%arg0: i32) -> (i32, i32, i32) {
    %c0_i32 = arith.constant 0 : i32
    %c0_i32_0 = arith.constant 0 : i32
    %c0_i32_1 = arith.constant 0 : i32
    %c0_i32_2 = arith.constant 0 : i32
    return %c0_i32, %c0_i32_0, %c0_i32_1 : i32, i32, i32
  }
  func.func @transform_2(%arg0: i32) -> (i32, i32) {
    %c0_i32 = arith.constant 0 : i32
    %c0_i32_0 = arith.constant 0 : i32
    %c0_i32_1 = arith.constant 0 : i32
    return %c0_i32, %c0_i32_0 : i32, i32
  }
  func.func @transform_3(%arg0: i32) -> (i32, i32, i32) {
    %c0_i32 = arith.constant 0 : i32
    %c0_i32_0 = arith.constant 0 : i32
    %c0_i32_1 = arith.constant 0 : i32
    return %arg0, %c0_i32, %c0_i32_0 : i32, i32, i32
  }
  func.func @transform_4(%arg0: i32) -> (i32, i32, i32) {
    %c0_i32 = arith.constant 0 : i32
    %c0_i32_0 = arith.constant 0 : i32
    %c0_i32_1 = arith.constant 0 : i32
    return %arg0, %c0_i32, %c0_i32_0 : i32, i32, i32
  }
  func.func @transform_5(%arg0: i32) -> (i32, i32, i32) {
    %c0_i32 = arith.constant 0 : i32
    %c0_i32_0 = arith.constant 0 : i32
    %c0_i32_1 = arith.constant 0 : i32
    return %arg0, %c0_i32, %c0_i32_0 : i32, i32, i32
  }
}

</mosaic_0001>

<llo_original>
// kernel: _conv_block_impl.3
$region0: #{_conv_block_impl.3}
  #allocation0 [shape = 'u32[]', space=smem, size = 0x4, offset = 0x4, fixed_abs, tag = 'smem constant byte address 0x4 - core index']
  #allocation1 [shape = 'u32[144,128]{1,0:T(1,128)}', space=vmem, size = 0x12000, scoped, tag = 'internal scratch']
  %s0 = inlined_call_operand.vmem [shape: f32[2,8,286], index: 0, kind: input, shape index: {}]
  %s1 = inlined_call_operand.vmem [shape: f32[8,1], index: 1, kind: input, shape index: {}]
  %s2 = inlined_call_operand.vmem [shape: f32[8,1], index: 2, kind: input, shape index: {}]
  %s3 = inlined_call_operand.vmem [shape: f32[2,8,286], index: 3, kind: output, shape index: {}]
  %s4 = sld [smem:[#allocation0]]
  $region45: #{_conv_block_impl.3} parent=0
    _
  %s6 = ssub.s32 1, %s4
  %s7 = scalar_select 0, %s6, %s4
  loop: start=0, step=1, limit=4
  $region2: #{_conv_block_impl.3} parent=0 // loop_pre_header
    _
  $region3: #{_conv_block_impl.3} parent=0 // loop_header
    %s9 = sphi 0, %s13
    %p10 = scmp.ge.s32.totalorder %s9, 4
    %s19 = sphi 0, %s21
    %s22 = sphi 0, %s19
    %s23 = sphi 0, %s22
    %s39 = sphi 0, %s23
    %s43 = sphi 0, %s43
    %s45 = sphi 0, %s43
    %s46 = sphi 0, %s45
    %s60 = sphi 0, %s46
    %s64 = sphi 0, %s64
    %s66 = sphi 0, %s64
    %s67 = sphi 0, %s66
    %s81 = sphi 0, %s67
    %s87 = sphi 0, %s89
    %s90 = sphi 0, %s87
    %s91 = sphi 0, %s90
    %s107 = sphi 0, %s91
  $region4: #{_conv_block_impl.3} parent=0 // loop_header_branch
    %12 = sbr.rel (%p10) target = $region8
  $region5: #{_conv_block_impl.3} parent=0 // loop_body
    %s14 = ssub.s32 %s9, 1
    %s15 = ssub.s32 %s9, 2
    %s16 = sadd.s32 %s9, 1
    %s17 = ssub.s32 %s9, %s16
    %p18 = scmp.eq.s32.totalorder %s17, 0
    %s20 = sadd.s32 %s19, 1
    %s21 = scalar_select %p18, %s19, %s20
    %p24 = pneg %p18
    %p25 = scmp.eq.s32.totalorder %s9, 1
    %p26 = por %p24, %p25
    %p27 = scmp.ne.s32.totalorder %s19, %s22
    %p28 = scmp.eq.s32.totalorder %s9, 0
    %p29 = por %p27, %p28
    %p30 = scmp.ne.s32.totalorder %s19, %s22
    %p31 = scmp.eq.s32.totalorder %s14, 1
    %p32 = por %p30, %p31
    %p33 = scmp.ne.s32.totalorder %s22, %s23
    %p34 = scmp.eq.s32.totalorder %s14, 0
    %p35 = por %p33, %p34
    %p36 = scmp.ne.s32.totalorder %s22, %s23
    %p37 = scmp.eq.s32.totalorder %s15, 1
    %p38 = por %p36, %p37
    %p40 = scmp.ne.s32.totalorder %s23, %s39
    %p41 = scmp.eq.s32.totalorder %s15, 0
    %p42 = por %p40, %p41
    %s44 = sadd.s32 %s43, 1
    %p47 = scmp.eq.s32.totalorder %s9, 1
    %p48 = scmp.ne.s32.totalorder %s43, %s45
    %p49 = scmp.eq.s32.totalorder %s9, 0
    %p50 = por %p48, %p49
    %p51 = scmp.ne.s32.totalorder %s43, %s45
    %p52 = scmp.eq.s32.totalorder %s14, 1
    %p53 = por %p51, %p52
    %p54 = scmp.ne.s32.totalorder %s45, %s46
    %p55 = scmp.eq.s32.totalorder %s14, 0
    %p56 = por %p54, %p55
    %p57 = scmp.ne.s32.totalorder %s45, %s46
    %p58 = scmp.eq.s32.totalorder %s15, 1
    %p59 = por %p57, %p58
    %p61 = scmp.ne.s32.totalorder %s46, %s60
    %p62 = scmp.eq.s32.totalorder %s15, 0
    %p63 = por %p61, %p62
    %s65 = sadd.s32 %s64, 1
    %p68 = scmp.eq.s32.totalorder %s9, 1
    %p69 = scmp.ne.s32.totalorder %s64, %s66
    %p70 = scmp.eq.s32.totalorder %s9, 0
    %p71 = por %p69, %p70
    %p72 = scmp.ne.s32.totalorder %s64, %s66
    %p73 = scmp.eq.s32.totalorder %s14, 1
    %p74 = por %p72, %p73
    %p75 = scmp.ne.s32.totalorder %s66, %s67
    %p76 = scmp.eq.s32.totalorder %s14, 0
    %p77 = por %p75, %p76
    %p78 = scmp.ne.s32.totalorder %s66, %s67
    %p79 = scmp.eq.s32.totalorder %s15, 1
    %p80 = por %p78, %p79
    %p82 = scmp.ne.s32.totalorder %s67, %s81
    %p83 = scmp.eq.s32.totalorder %s15, 0
    %p84 = por %p82, %p83
    %s85 = ssub.s32 %s9, %s16
    %p86 = scmp.eq.s32.totalorder %s85, 0
    %s88 = sadd.s32 %s87, 1
    %s89 = scalar_select %p86, %s87, %s88
    %p92 = pneg %p86
    %p93 = scmp.eq.s32.totalorder %s9, 1
    %p94 = por %p92, %p93
    %p95 = scmp.ne.s32.totalorder %s87, %s90
    %p96 = scmp.eq.s32.totalorder %s9, 0
    %p97 = por %p95, %p96
    %p98 = scmp.ne.s32.totalorder %s87, %s90
    %p99 = scmp.eq.s32.totalorder %s14, 1
    %p100 = por %p98, %p99
    %p101 = scmp.ne.s32.totalorder %s90, %s91
    %p102 = scmp.eq.s32.totalorder %s14, 0
    %p103 = por %p101, %p102
    %p104 = scmp.ne.s32.totalorder %s90, %s91
    %p105 = scmp.eq.s32.totalorder %s15, 1
    %p106 = por %p104, %p105
    %p108 = scmp.ne.s32.totalorder %s91, %s107
    %p109 = scmp.eq.s32.totalorder %s15, 0
    %p110 = por %p108, %p109
    %p111 = scmp.le.s32.totalorder 1, %s9
    %p112 = scmp.lt.s32.totalorder %s9, 3
    %p113 = pnand %p111, %p112
    %p114 = pneg %p113
    // Predicated region
    $region9: #{_conv_block_impl.3} parent=5 // pred_check
      _
    $region10: #{_conv_block_impl.3} parent=5 // pred_check_branch
      %116 = sbr.rel (%p113) target = $region12
    $region11: #{_conv_block_impl.3} parent=5 // pred_region
      %s117 = ssub.s32 %s9, 1
      // Predicated region
      $region13: #{_conv_block_impl.3} parent=11 // pred_check
        %p118 = pneg %p56
      $region14: #{_conv_block_impl.3} parent=11 // pred_check_branch
        %120 = sbr.rel (%p118) target = $region16
      $region15: #{_conv_block_impl.3} parent=11 // pred_region
        _
      $region16: #{_conv_block_impl.3} parent=11 // pred_fallthru
        _
      // Predicated region
      $region17: #{_conv_block_impl.3} parent=11 // pred_check
        %p121 = pneg %p77
      $region18: #{_conv_block_impl.3} parent=11 // pred_check_branch
        %123 = sbr.rel (%p121) target = $region20
      $region19: #{_conv_block_impl.3} parent=11 // pred_region
        _
      $region20: #{_conv_block_impl.3} parent=11 // pred_fallthru
        _
    $region12: #{_conv_block_impl.3} parent=5 // pred_fallthru
      _
    %p124 = scmp.lt.s32.totalorder %s9, 2
    // Predicated region
    $region21: #{_conv_block_impl.3} parent=5 // pred_check
      %p125 = pneg %p124
    $region22: #{_conv_block_impl.3} parent=5 // pred_check_branch
      %127 = sbr.rel (%p125) target = $region24
    $region23: #{_conv_block_impl.3} parent=5 // pred_region
      // Predicated region
      $region25: #{_conv_block_impl.3} parent=23 // pred_check
        %p128 = pneg %p29
      $region26: #{_conv_block_impl.3} parent=23 // pred_check_branch
        %130 = sbr.rel (%p128) target = $region28
      $region27: #{_conv_block_impl.3} parent=23 // pred_region
        %p131 = scmp.lt.s32.totalorder %s9, 1
        %s132 = scalar_select %p131, %s9, 1
        %s133 = smul.addr %s132, 3
        %s134 = smul.addr %s133, 8
        %s135 = scalar_lea.vmem %s0, %s134
      $region28: #{_conv_block_impl.3} parent=23 // pred_fallthru
        _
    $region24: #{_conv_block_impl.3} parent=5 // pred_fallthru
      _
    %p136 = scmp.le.s32.totalorder 1, %s9
    %p137 = scmp.lt.s32.totalorder %s9, 3
    %p138 = pnand %p136, %p137
    %p139 = pneg %p138
    // Predicated region
    $region29: #{_conv_block_impl.3} parent=5 // pred_check
      _
    $region30: #{_conv_block_impl.3} parent=5 // pred_check_branch
      %141 = sbr.rel (%p138) target = $region32
    $region31: #{_conv_block_impl.3} parent=5 // pred_region
      %s142 = ssub.s32 %s9, 1
      %p143 = scmp.lt.s32.totalorder %s14, 1
      %s144 = scalar_select %p143, %s14, 1
      %s145 = smul.addr %s144, 3
      %s146 = smul.addr %s145, 8
      %s147 = scalar_lea.vmem %s0, %s146
      %p148 = pneg %p35
      %p149 = pneg %p32
      %p150 = pneg %p56
      %p151 = pneg %p53
      %p152 = pneg %p77
      %p153 = pneg %p74
      %p154 = pneg %p103
      %p155 = pneg %p100
      %p156 = scmp.lt.s32.totalorder %s14, 1
      %s157 = scalar_select %p156, %s14, 1
      %s158 = smul.addr %s157, 3
      %s159 = smul.addr %s158, 8
      %s160 = scalar_lea.vmem %s3, %s159
      %p161 = scmp.lt.s32.totalorder %s14, 1
      %s162 = scalar_select %p161, %s14, 1
      %s163 = smul.addr %s162, 3
      %s164 = smul.addr %s163, 8
      %s165 = scalar_lea.vmem %s0, %s164
      %p166 = scmp.lt.s32.totalorder %s14, 1
      %s167 = scalar_select %p166, %s14, 1
      %s168 = smul.addr %s167, 3
      %s169 = smul.addr %s168, 8
      %s170 = scalar_lea.vmem %s3, %s169
      %v171 = vld [vmem:[%s165] sm:$0xff]
      %v172 = vld [vmem:[%s165 + $0x8] sm:$0xff]
      %v173 = vld [vmem:[%s165 + $0x10] sm:$0xff]
      %v174 = vld [vmem:[%s1] sm:$0xff]
      %176 = vset.pattern.permute.xlu0 0
      %177 = vperm.xlu0 %176, %v174
      %v178 = vpop.permute.xlu0 %177
      %v180 = vmul.f32 %v171, %v178
      %v181 = vmul.f32 %v172, %v178
      %v182 = vmul.f32 %v173, %v178
      %v183 = vld [vmem:[%s2] sm:$0xff]
      %185 = vset.pattern.permute.xlu0 0
      %186 = vperm.xlu0 %185, %v183
      %v187 = vpop.permute.xlu0 %186
      %v189 = vadd.f32 %v180, %v187
      %v190 = vadd.f32 %v181, %v187
      %v191 = vadd.f32 %v182, %v187
      %v192 = vmax.f32 %v189, 0.0
      %v193 = vmax.f32 %v190, 0.0
      %v194 = vmax.f32 %v191, 0.0
      %195 = vst [vmem:[%s170] sm:$0xff] %v192
      %196 = vst [vmem:[%s170 + $0x8] sm:$0xff] %v193
      %vm197 = vcmask 244736
      %198 = vst.msk [vmem:[%s170 + $0x10] sm:$0xff] %vm197, %v194
      %p199 = scmp.lt.s32.totalorder %s14, 1
      %s200 = scalar_select %p199, %s14, 1
      %s201 = smul.addr %s200, 3
      %s202 = smul.addr %s201, 8
      %s203 = scalar_lea.vmem %s3, %s202
      // Predicated region
      $region33: #{_conv_block_impl.3} parent=31 // pred_check
        %p204 = pneg %p100
      $region34: #{_conv_block_impl.3} parent=31 // pred_check_branch
        %206 = sbr.rel (%p204) target = $region36
      $region35: #{_conv_block_impl.3} parent=31 // pred_region
        _
      $region36: #{_conv_block_impl.3} parent=31 // pred_fallthru
        _
    $region32: #{_conv_block_impl.3} parent=5 // pred_fallthru
      _
    %p207 = scmp.le.s32.totalorder 2, %s9
    // Predicated region
    $region37: #{_conv_block_impl.3} parent=5 // pred_check
      %p208 = pneg %p207
    $region38: #{_conv_block_impl.3} parent=5 // pred_check_branch
      %210 = sbr.rel (%p208) target = $region40
    $region39: #{_conv_block_impl.3} parent=5 // pred_region
      %s211 = ssub.s32 %s9, 2
      // Predicated region
      $region41: #{_conv_block_impl.3} parent=39 // pred_check
        %p212 = pneg %p106
      $region42: #{_conv_block_impl.3} parent=39 // pred_check_branch
        %214 = sbr.rel (%p212) target = $region44
      $region43: #{_conv_block_impl.3} parent=39 // pred_region
        %p215 = scmp.lt.s32.totalorder %s15, 1
        %s216 = scalar_select %p215, %s15, 1
        %s217 = smul.addr %s216, 3
        %s218 = smul.addr %s217, 8
        %s219 = scalar_lea.vmem %s3, %s218
      $region44: #{_conv_block_impl.3} parent=39 // pred_fallthru
        _
    $region40: #{_conv_block_impl.3} parent=5 // pred_fallthru
      _
  $region6: #{_conv_block_impl.3} parent=0 // loop_footer
    %s13 = sadd.s32 1, %s9
  $region7: #{_conv_block_impl.3} parent=0 // loop_footer_branch
    %8 = sbr.rel target = $region3
  $region8: #{_conv_block_impl.3} parent=0 // loop_exit
    _

// kernel: _conv_block_impl.2
$region0: #{_conv_block_impl.2}
  #allocation0 [shape = 'u32[]', space=smem, size = 0x4, offset = 0x4, fixed_abs, tag = 'smem constant byte address 0x4 - core index']
  #allocation1 [shape = 'u32[144,128]{1,0:T(1,128)}', space=vmem, size = 0x12000, scoped, tag = 'internal scratch']
  %s0 = inlined_call_operand.vmem [shape: bf16[2,4,324], index: 0, kind: input, shape index: {}]
  %s1 = inlined_call_operand.vmem [shape: bf16[9,8,4], index: 1, kind: input, shape index: {}]
  %s2 = inlined_call_operand.vmem [shape: f32[1,286], index: 2, kind: input, shape index: {}]
  %s3 = inlined_call_operand.vmem [shape: f32[2,8,286], index: 3, kind: output, shape index: {0}]
  %s4 = inlined_call_operand.vmem [shape: f32[2,8,1], index: 4, kind: output, shape index: {1}]
  %s5 = inlined_call_operand.vmem [shape: f32[2,8,1], index: 5, kind: output, shape index: {2}]
  %6 = xla_tuple %s3, %s4, %s5
  %s7 = sld [smem:[#allocation0]]
  $region61: #{_conv_block_impl.2} parent=0
    _
  %s9 = ssub.s32 1, %s7
  %s10 = scalar_select 0, %s9, %s7
  loop: start=0, step=1, limit=4
  $region2: #{_conv_block_impl.2} parent=0 // loop_pre_header
    _
  $region3: #{_conv_block_impl.2} parent=0 // loop_header
    %s12 = sphi 0, %s16
    %p13 = scmp.ge.s32.totalorder %s12, 4
    %s22 = sphi 0, %s24
    %s25 = sphi 0, %s22
    %s26 = sphi 0, %s25
    %s42 = sphi 0, %s26
    %s46 = sphi 0, %s46
    %s48 = sphi 0, %s46
    %s49 = sphi 0, %s48
    %s63 = sphi 0, %s49
    %s67 = sphi 0, %s67
    %s69 = sphi 0, %s67
    %s70 = sphi 0, %s69
    %s84 = sphi 0, %s70
    %s90 = sphi 0, %s92
    %s93 = sphi 0, %s90
    %s94 = sphi 0, %s93
    %s110 = sphi 0, %s94
    %s116 = sphi 0, %s118
    %s119 = sphi 0, %s116
    %s120 = sphi 0, %s119
    %s136 = sphi 0, %s120
    %s142 = sphi 0, %s144
    %s145 = sphi 0, %s142
    %s146 = sphi 0, %s145
    %s162 = sphi 0, %s146
  $region4: #{_conv_block_impl.2} parent=0 // loop_header_branch
    %15 = sbr.rel (%p13) target = $region8
  $region5: #{_conv_block_impl.2} parent=0 // loop_body
    %s17 = ssub.s32 %s12, 1
    %s18 = ssub.s32 %s12, 2
    %s19 = sadd.s32 %s12, 1
    %s20 = ssub.s32 %s12, %s19
    %p21 = scmp.eq.s32.totalorder %s20, 0
    %s23 = sadd.s32 %s22, 1
    %s24 = scalar_select %p21, %s22, %s23
    %p27 = pneg %p21
    %p28 = scmp.eq.s32.totalorder %s12, 1
    %p29 = por %p27, %p28
    %p30 = scmp.ne.s32.totalorder %s22, %s25
    %p31 = scmp.eq.s32.totalorder %s12, 0
    %p32 = por %p30, %p31
    %p33 = scmp.ne.s32.totalorder %s22, %s25
    %p34 = scmp.eq.s32.totalorder %s17, 1
    %p35 = por %p33, %p34
    %p36 = scmp.ne.s32.totalorder %s25, %s26
    %p37 = scmp.eq.s32.totalorder %s17, 0
    %p38 = por %p36, %p37
    %p39 = scmp.ne.s32.totalorder %s25, %s26
    %p40 = scmp.eq.s32.totalorder %s18, 1
    %p41 = por %p39, %p40
    %p43 = scmp.ne.s32.totalorder %s26, %s42
    %p44 = scmp.eq.s32.totalorder %s18, 0
    %p45 = por %p43, %p44
    %s47 = sadd.s32 %s46, 1
    %p50 = scmp.eq.s32.totalorder %s12, 1
    %p51 = scmp.ne.s32.totalorder %s46, %s48
    %p52 = scmp.eq.s32.totalorder %s12, 0
    %p53 = por %p51, %p52
    %p54 = scmp.ne.s32.totalorder %s46, %s48
    %p55 = scmp.eq.s32.totalorder %s17, 1
    %p56 = por %p54, %p55
    %p57 = scmp.ne.s32.totalorder %s48, %s49
    %p58 = scmp.eq.s32.totalorder %s17, 0
    %p59 = por %p57, %p58
    %p60 = scmp.ne.s32.totalorder %s48, %s49
    %p61 = scmp.eq.s32.totalorder %s18, 1
    %p62 = por %p60, %p61
    %p64 = scmp.ne.s32.totalorder %s49, %s63
    %p65 = scmp.eq.s32.totalorder %s18, 0
    %p66 = por %p64, %p65
    %s68 = sadd.s32 %s67, 1
    %p71 = scmp.eq.s32.totalorder %s12, 1
    %p72 = scmp.ne.s32.totalorder %s67, %s69
    %p73 = scmp.eq.s32.totalorder %s12, 0
    %p74 = por %p72, %p73
    %p75 = scmp.ne.s32.totalorder %s67, %s69
    %p76 = scmp.eq.s32.totalorder %s17, 1
    %p77 = por %p75, %p76
    %p78 = scmp.ne.s32.totalorder %s69, %s70
    %p79 = scmp.eq.s32.totalorder %s17, 0
    %p80 = por %p78, %p79
    %p81 = scmp.ne.s32.totalorder %s69, %s70
    %p82 = scmp.eq.s32.totalorder %s18, 1
    %p83 = por %p81, %p82
    %p85 = scmp.ne.s32.totalorder %s70, %s84
    %p86 = scmp.eq.s32.totalorder %s18, 0
    %p87 = por %p85, %p86
    %s88 = ssub.s32 %s12, %s19
    %p89 = scmp.eq.s32.totalorder %s88, 0
    %s91 = sadd.s32 %s90, 1
    %s92 = scalar_select %p89, %s90, %s91
    %p95 = pneg %p89
    %p96 = scmp.eq.s32.totalorder %s12, 1
    %p97 = por %p95, %p96
    %p98 = scmp.ne.s32.totalorder %s90, %s93
    %p99 = scmp.eq.s32.totalorder %s12, 0
    %p100 = por %p98, %p99
    %p101 = scmp.ne.s32.totalorder %s90, %s93
    %p102 = scmp.eq.s32.totalorder %s17, 1
    %p103 = por %p101, %p102
    %p104 = scmp.ne.s32.totalorder %s93, %s94
    %p105 = scmp.eq.s32.totalorder %s17, 0
    %p106 = por %p104, %p105
    %p107 = scmp.ne.s32.totalorder %s93, %s94
    %p108 = scmp.eq.s32.totalorder %s18, 1
    %p109 = por %p107, %p108
    %p111 = scmp.ne.s32.totalorder %s94, %s110
    %p112 = scmp.eq.s32.totalorder %s18, 0
    %p113 = por %p111, %p112
    %s114 = ssub.s32 %s12, %s19
    %p115 = scmp.eq.s32.totalorder %s114, 0
    %s117 = sadd.s32 %s116, 1
    %s118 = scalar_select %p115, %s116, %s117
    %p121 = pneg %p115
    %p122 = scmp.eq.s32.totalorder %s12, 1
    %p123 = por %p121, %p122
    %p124 = scmp.ne.s32.totalorder %s116, %s119
    %p125 = scmp.eq.s32.totalorder %s12, 0
    %p126 = por %p124, %p125
    %p127 = scmp.ne.s32.totalorder %s116, %s119
    %p128 = scmp.eq.s32.totalorder %s17, 1
    %p129 = por %p127, %p128
    %p130 = scmp.ne.s32.totalorder %s119, %s120
    %p131 = scmp.eq.s32.totalorder %s17, 0
    %p132 = por %p130, %p131
    %p133 = scmp.ne.s32.totalorder %s119, %s120
    %p134 = scmp.eq.s32.totalorder %s18, 1
    %p135 = por %p133, %p134
    %p137 = scmp.ne.s32.totalorder %s120, %s136
    %p138 = scmp.eq.s32.totalorder %s18, 0
    %p139 = por %p137, %p138
    %s140 = ssub.s32 %s12, %s19
    %p141 = scmp.eq.s32.totalorder %s140, 0
    %s143 = sadd.s32 %s142, 1
    %s144 = scalar_select %p141, %s142, %s143
    %p147 = pneg %p141
    %p148 = scmp.eq.s32.totalorder %s12, 1
    %p149 = por %p147, %p148
    %p150 = scmp.ne.s32.totalorder %s142, %s145
    %p151 = scmp.eq.s32.totalorder %s12, 0
    %p152 = por %p150, %p151
    %p153 = scmp.ne.s32.totalorder %s142, %s145
    %p154 = scmp.eq.s32.totalorder %s17, 1
    %p155 = por %p153, %p154
    %p156 = scmp.ne.s32.totalorder %s145, %s146
    %p157 = scmp.eq.s32.totalorder %s17, 0
    %p158 = por %p156, %p157
    %p159 = scmp.ne.s32.totalorder %s145, %s146
    %p160 = scmp.eq.s32.totalorder %s18, 1
    %p161 = por %p159, %p160
    %p163 = scmp.ne.s32.totalorder %s146, %s162
    %p164 = scmp.eq.s32.totalorder %s18, 0
    %p165 = por %p163, %p164
    %p166 = scmp.le.s32.totalorder 1, %s12
    %p167 = scmp.lt.s32.totalorder %s12, 3
    %p168 = pnand %p166, %p167
    %p169 = pneg %p168
    // Predicated region
    $region9: #{_conv_block_impl.2} parent=5 // pred_check
      _
    $region10: #{_conv_block_impl.2} parent=5 // pred_check_branch
      %171 = sbr.rel (%p168) target = $region12
    $region11: #{_conv_block_impl.2} parent=5 // pred_region
      %s172 = ssub.s32 %s12, 1
      // Predicated region
      $region13: #{_conv_block_impl.2} parent=11 // pred_check
        %p173 = pneg %p59
      $region14: #{_conv_block_impl.2} parent=11 // pred_check_branch
        %175 = sbr.rel (%p173) target = $region16
      $region15: #{_conv_block_impl.2} parent=11 // pred_region
        _
      $region16: #{_conv_block_impl.2} parent=11 // pred_fallthru
        _
      // Predicated region
      $region17: #{_conv_block_impl.2} parent=11 // pred_check
        %p176 = pneg %p80
      $region18: #{_conv_block_impl.2} parent=11 // pred_check_branch
        %178 = sbr.rel (%p176) target = $region20
      $region19: #{_conv_block_impl.2} parent=11 // pred_region
        _
      $region20: #{_conv_block_impl.2} parent=11 // pred_fallthru
        _
    $region12: #{_conv_block_impl.2} parent=5 // pred_fallthru
      _
    %p179 = scmp.lt.s32.totalorder %s12, 2
    // Predicated region
    $region21: #{_conv_block_impl.2} parent=5 // pred_check
      %p180 = pneg %p179
    $region22: #{_conv_block_impl.2} parent=5 // pred_check_branch
      %182 = sbr.rel (%p180) target = $region24
    $region23: #{_conv_block_impl.2} parent=5 // pred_region
      // Predicated region
      $region25: #{_conv_block_impl.2} parent=23 // pred_check
        %p183 = pneg %p32
      $region26: #{_conv_block_impl.2} parent=23 // pred_check_branch
        %185 = sbr.rel (%p183) target = $region28
      $region27: #{_conv_block_impl.2} parent=23 // pred_region
        %p186 = scmp.lt.s32.totalorder %s12, 1
        %s187 = scalar_select %p186, %s12, 1
        %s188 = smul.addr %s187, 3
        %s189 = smul.addr %s188, 2
        %s190 = scalar_lea.vmem %s0, %s189
      $region28: #{_conv_block_impl.2} parent=23 // pred_fallthru
        _
    $region24: #{_conv_block_impl.2} parent=5 // pred_fallthru
      _
    %p191 = scmp.le.s32.totalorder 1, %s12
    %p192 = scmp.lt.s32.totalorder %s12, 3
    %p193 = pnand %p191, %p192
    %p194 = pneg %p193
    // Predicated region
    $region29: #{_conv_block_impl.2} parent=5 // pred_check
      _
    $region30: #{_conv_block_impl.2} parent=5 // pred_check_branch
      %196 = sbr.rel (%p193) target = $region32
    $region31: #{_conv_block_impl.2} parent=5 // pred_region
      %s197 = ssub.s32 %s12, 1
      %p198 = scmp.lt.s32.totalorder %s17, 1
      %s199 = scalar_select %p198, %s17, 1
      %s200 = smul.addr %s199, 3
      %s201 = smul.addr %s200, 2
      %s202 = scalar_lea.vmem %s0, %s201
      %p203 = pneg %p38
      %p204 = pneg %p35
      %p205 = pneg %p59
      %p206 = pneg %p56
      %p207 = pneg %p80
      %p208 = pneg %p77
      %p209 = pneg %p106
      %p210 = pneg %p103
      %p211 = scmp.lt.s32.totalorder %s17, 1
      %s212 = scalar_select %p211, %s17, 1
      %s213 = smul.addr %s212, 3
      %s214 = smul.addr %s213, 8
      %s215 = scalar_lea.vmem %s3, %s214
      %p216 = pneg %p132
      %p217 = pneg %p129
      %p218 = scmp.lt.s32.totalorder %s17, 1
      %s219 = scalar_select %p218, %s17, 1
      %s220 = smul.addr %s219, 8
      %s221 = scalar_lea.vmem %s4, %s220
      %p222 = pneg %p158
      %p223 = pneg %p155
      %p224 = scmp.lt.s32.totalorder %s17, 1
      %s225 = scalar_select %p224, %s17, 1
      %s226 = smul.addr %s225, 8
      %s227 = scalar_lea.vmem %s5, %s226
      %p228 = scmp.lt.s32.totalorder %s17, 1
      %s229 = scalar_select %p228, %s17, 1
      %s230 = smul.addr %s229, 3
      %s231 = smul.addr %s230, 2
      %s232 = scalar_lea.vmem %s0, %s231
      %p233 = scmp.lt.s32.totalorder %s17, 1
      %s234 = scalar_select %p233, %s17, 1
      %s235 = smul.addr %s234, 3
      %s236 = smul.addr %s235, 8
      %s237 = scalar_lea.vmem %s3, %s236
      %p238 = scmp.lt.s32.totalorder %s17, 1
      %s239 = scalar_select %p238, %s17, 1
      %s240 = smul.addr %s239, 8
      %s241 = scalar_lea.vmem %s4, %s240
      %p242 = scmp.lt.s32.totalorder %s17, 1
      %s243 = scalar_select %p242, %s17, 1
      %s244 = smul.addr %s243, 8
      %s245 = scalar_lea.vmem %s5, %s244
      %v247 = vld [vmem:[%s1] sm:$0xf]
      %v248 = vld [vmem:[%s232] sm:$0x3f]
      %s249 = scalar_lea.vmem %s1, 4
      %v250 = vld [vmem:[%s249] sm:$0xf]
      %v252 = vcombine.high %v248, %v248
      %v254 = vunpack.c.l.s4 1983009808
      %v255 = vunpack.c.0.s8 %v254
      %v256 = vlaneseq
      %v257 = vshrl.u32 %v256, 7
      %v258 = vsub.s32 %v255, %v257
      %v259 = vrot.slane %v248, %v258
      %v261 = vunpack.c.l.s4 1983009808
      %v262 = vunpack.c.0.s8 %v261
      %v263 = vlaneseq
      %v264 = vshrl.u32 %v263, 7
      %v265 = vsub.s32 %v262, %v264
      %v266 = vrot.slane %v252, %v265
      %v267 = vcombine.high %v259, %v259
      %268 = vrot.lane.b32.xlu0 %v259, 127
      %v269 = vpop.permute.xlu0 %268
      %270 = vrot.lane.b32.xlu0 %v267, 127
      %v271 = vpop.permute.xlu0 %270
      %272 = vrot.lane.b32.xlu0 %v266, 127
      %v273 = vpop.permute.xlu0 %272
      %vm274 = vcmask 1039360
      %v275 = vsel %vm274, %v269, %v271
      %v276 = vsel %vm274, %v271, %v273
      %vm277 = vcmask 31744
      %v279 = vsel %vm277, %v250, 0
      %vm281 = vcmask 1041408
      %v283 = vsel %vm281, %v275, 0
      %v286 = vsel %vm281, %v276, 0
      %v289 = vsel %vm281, %v273, 0
      %291 = vmatprep.subr.bf16.mxu0 %v286
      %292 = vmatpush1.bf16.msra.mxu0 %v283
      %293 = vmatprep.subr.bf16.mxu0 0
      %294 = vmatpush1.bf16.msra.mxu0 0
      %295 = vmatprep.subr.bf16.mxu0 0
      %296 = vmatpush1.bf16.msra.mxu0 0
      %297 = vmatprep.subr.bf16.mxu0 0
      %298 = vmatpush1.bf16.msra.mxu0 0
      %299 = vmatprep.subr.bf16.mxu0 0
      %300 = vmatpush1.bf16.msra.mxu0 0
      %301 = vmatprep.subr.bf16.mxu0 0
      %302 = vmatpush1.bf16.msra.mxu0 0
      %303 = vmatprep.subr.bf16.mxu0 0
      %304 = vmatpush1.bf16.msra.mxu0 0
      %305 = vmatprep.subr.bf16.mxu0 0
      %306 = vmatpush1.bf16.msra.mxu0 0
      %307 = vmatprep.subr.bf16.mxu0 0
      %308 = vmatpush1.bf16.msra.mxu0 0
      %309 = vmatprep.subr.bf16.mxu0 0
      %310 = vmatpush1.bf16.msra.mxu0 0
      %311 = vmatprep.subr.bf16.mxu0 0
      %312 = vmatpush1.bf16.msra.mxu0 0
      %313 = vmatprep.subr.bf16.mxu0 0
      %314 = vmatpush1.bf16.msra.mxu0 0
      %315 = vmatprep.subr.bf16.mxu0 0
      %316 = vmatpush1.bf16.msra.mxu0 0
      %317 = vmatprep.subr.bf16.mxu0 0
      %318 = vmatpush1.bf16.msra.mxu0 0
      %319 = vmatprep.subr.bf16.mxu0 0
      %320 = vmatpush1.bf16.msra.mxu0 0
      %321 = vmatprep.subr.bf16.mxu0 0
      %322 = vmatpush1.bf16.msra.mxu0 0
      %323 = vmatprep.mubr.bf16.mxu0 0
      %324 = vmatmul.mubr.bf16.gmra.mrb[0].mxu0 %v279
      %v325 = vpop.f32.mrb[0].mxu0
      %v326 = vadd.f32 0.0, %v325
      %v327 = vpop.f32.mrb[0].mxu0
      %v328 = vadd.f32 0.0, %v327
      %v329 = vpop.f32.mrb[0].mxu0
      %v330 = vpop.f32.mrb[0].mxu0
      %331 = vdwg.mxu0
      %332 = vmatprep.subr.bf16.mxu0 0
      %333 = vmatpush1.bf16.msra.mxu0 %v289
      %334 = vmatprep.subr.bf16.mxu0 0
      %335 = vmatpush1.bf16.msra.mxu0 0
      %336 = vmatprep.subr.bf16.mxu0 0
      %337 = vmatpush1.bf16.msra.mxu0 0
      %338 = vmatprep.subr.bf16.mxu0 0
      %339 = vmatpush1.bf16.msra.mxu0 0
      %340 = vmatprep.subr.bf16.mxu0 0
      %341 = vmatpush1.bf16.msra.mxu0 0
      %342 = vmatprep.subr.bf16.mxu0 0
      %343 = vmatpush1.bf16.msra.mxu0 0
      %344 = vmatprep.subr.bf16.mxu0 0
      %345 = vmatpush1.bf16.msra.mxu0 0
      %346 = vmatprep.subr.bf16.mxu0 0
      %347 = vmatpush1.bf16.msra.mxu0 0
      %348 = vmatprep.subr.bf16.mxu0 0
      %349 = vmatpush1.bf16.msra.mxu0 0
      %350 = vmatprep.subr.bf16.mxu0 0
      %351 = vmatpush1.bf16.msra.mxu0 0
      %352 = vmatprep.subr.bf16.mxu0 0
      %353 = vmatpush1.bf16.msra.mxu0 0
      %354 = vmatprep.subr.bf16.mxu0 0
      %355 = vmatpush1.bf16.msra.mxu0 0
      %356 = vmatprep.subr.bf16.mxu0 0
      %357 = vmatpush1.bf16.msra.mxu0 0
      %358 = vmatprep.subr.bf16.mxu0 0
      %359 = vmatpush1.bf16.msra.mxu0 0
      %360 = vmatprep.subr.bf16.mxu0 0
      %361 = vmatpush1.bf16.msra.mxu0 0
      %362 = vmatprep.subr.bf16.mxu0 0
      %363 = vmatpush1.bf16.msra.mxu0 0
      %364 = vmatprep.mubr.bf16.mxu0 0
      %365 = vmatmul.mubr.bf16.gmra.mrb[0].mxu0 %v279
      %v366 = vpop.f32.mrb[0].mxu0
      %v367 = vadd.f32 0.0, %v366
      %v368 = vpop.f32.mrb[0].mxu0
      %v369 = vpop.f32.mrb[0].mxu0
      %v370 = vpop.f32.mrb[0].mxu0
      %371 = vdwg.mxu0
      %v373 = vsel %vm277, %v247, 0
      %v376 = vsel %vm281, %v259, 0
      %v379 = vsel %vm281, %v267, 0
      %v382 = vsel %vm281, %v266, 0
      %384 = vmatprep.subr.bf16.mxu0 %v379
      %385 = vmatpush1.bf16.msra.mxu0 %v376
      %386 = vmatprep.subr.bf16.mxu0 0
      %387 = vmatpush1.bf16.msra.mxu0 0
      %388 = vmatprep.subr.bf16.mxu0 0
      %389 = vmatpush1.bf16.msra.mxu0 0
      %390 = vmatprep.subr.bf16.mxu0 0
      %391 = vmatpush1.bf16.msra.mxu0 0
      %392 = vmatprep.subr.bf16.mxu0 0
      %393 = vmatpush1.bf16.msra.mxu0 0
      %394 = vmatprep.subr.bf16.mxu0 0
      %395 = vmatpush1.bf16.msra.mxu0 0
      %396 = vmatprep.subr.bf16.mxu0 0
      %397 = vmatpush1.bf16.msra.mxu0 0
      %398 = vmatprep.subr.bf16.mxu0 0
      %399 = vmatpush1.bf16.msra.mxu0 0
      %400 = vmatprep.subr.bf16.mxu0 0
      %401 = vmatpush1.bf16.msra.mxu0 0
      %402 = vmatprep.subr.bf16.mxu0 0
      %403 = vmatpush1.bf16.msra.mxu0 0
      %404 = vmatprep.subr.bf16.mxu0 0
      %405 = vmatpush1.bf16.msra.mxu0 0
      %406 = vmatprep.subr.bf16.mxu0 0
      %407 = vmatpush1.bf16.msra.mxu0 0
      %408 = vmatprep.subr.bf16.mxu0 0
      %409 = vmatpush1.bf16.msra.mxu0 0
      %410 = vmatprep.subr.bf16.mxu0 0
      %411 = vmatpush1.bf16.msra.mxu0 0
      %412 = vmatprep.subr.bf16.mxu0 0
      %413 = vmatpush1.bf16.msra.mxu0 0
      %414 = vmatprep.subr.bf16.mxu0 0
      %415 = vmatpush1.bf16.msra.mxu0 0
      %416 = vmatprep.mubr.bf16.mxu0 0
      %417 = vmatmul.mubr.bf16.gmra.mrb[0].mxu0 %v373
      %v418 = vpop.f32.mrb[0].mxu0
      %v419 = vadd.f32 %v326, %v418
      %v420 = vpop.f32.mrb[0].mxu0
      %v421 = vadd.f32 %v328, %v420
      %v422 = vpop.f32.mrb[0].mxu0
      %v423 = vpop.f32.mrb[0].mxu0
      %424 = vdwg.mxu0
      %425 = vmatprep.subr.bf16.mxu0 0
      %426 = vmatpush1.bf16.msra.mxu0 %v382
      %427 = vmatprep.subr.bf16.mxu0 0
      %428 = vmatpush1.bf16.msra.mxu0 0
      %429 = vmatprep.subr.bf16.mxu0 0
      %430 = vmatpush1.bf16.msra.mxu0 0
      %431 = vmatprep.subr.bf16.mxu0 0
      %432 = vmatpush1.bf16.msra.mxu0 0
      %433 = vmatprep.subr.bf16.mxu0 0
      %434 = vmatpush1.bf16.msra.mxu0 0
      %435 = vmatprep.subr.bf16.mxu0 0
      %436 = vmatpush1.bf16.msra.mxu0 0
      %437 = vmatprep.subr.bf16.mxu0 0
      %438 = vmatpush1.bf16.msra.mxu0 0
      %439 = vmatprep.subr.bf16.mxu0 0
      %440 = vmatpush1.bf16.msra.mxu0 0
      %441 = vmatprep.subr.bf16.mxu0 0
      %442 = vmatpush1.bf16.msra.mxu0 0
      %443 = vmatprep.subr.bf16.mxu0 0
      %444 = vmatpush1.bf16.msra.mxu0 0
      %445 = vmatprep.subr.bf16.mxu0 0
      %446 = vmatpush1.bf16.msra.mxu0 0
      %447 = vmatprep.subr.bf16.mxu0 0
      %448 = vmatpush1.bf16.msra.mxu0 0
      %449 = vmatprep.subr.bf16.mxu0 0
      %450 = vmatpush1.bf16.msra.mxu0 0
      %451 = vmatprep.subr.bf16.mxu0 0
      %452 = vmatpush1.bf16.msra.mxu0 0
      %453 = vmatprep.subr.bf16.mxu0 0
      %454 = vmatpush1.bf16.msra.mxu0 0
      %455 = vmatprep.subr.bf16.mxu0 0
      %456 = vmatpush1.bf16.msra.mxu0 0
      %457 = vmatprep.mubr.bf16.mxu0 0
      %458 = vmatmul.mubr.bf16.gmra.mrb[0].mxu0 %v373
      %v459 = vpop.f32.mrb[0].mxu0
      %v460 = vadd.f32 %v367, %v459
      %v461 = vpop.f32.mrb[0].mxu0
      %v462 = vpop.f32.mrb[0].mxu0
      %v463 = vpop.f32.mrb[0].mxu0
      %464 = vdwg.mxu0
      %s465 = scalar_lea.vmem %s1, 8
      %v466 = vld [vmem:[%s465] sm:$0xf]
      %v467 = vld [vmem:[%s232] sm:$0x3f]
      %v469 = vcombine.high %v467, %v467
      %v471 = vunpack.c.l.s4 1983009808
      %v472 = vunpack.c.0.s8 %v471
      %v473 = vlaneseq
      %v474 = vshrl.u32 %v473, 7
      %v475 = vsub.s32 %v472, %v474
      %v476 = vrot.slane %v467, %v475
      %v478 = vunpack.c.l.s4 1983009808
      %v479 = vunpack.c.0.s8 %v478
      %v480 = vlaneseq
      %v481 = vshrl.u32 %v480, 7
      %v482 = vsub.s32 %v479, %v481
      %v483 = vrot.slane %v469, %v482
      %v484 = vcombine.high %v476, %v476
      %485 = vrot.lane.b32.xlu0 %v476, 126
      %v486 = vpop.permute.xlu0 %485
      %487 = vrot.lane.b32.xlu0 %v484, 126
      %v488 = vpop.permute.xlu0 %487
      %489 = vrot.lane.b32.xlu0 %v483, 126
      %v490 = vpop.permute.xlu0 %489
      %vm491 = vcmask 1031168
      %v492 = vsel %vm491, %v486, %v488
      %v493 = vsel %vm491, %v488, %v490
      %v495 = vsel %vm277, %v466, 0
      %v498 = vsel %vm281, %v492, 0
      %v501 = vsel %vm281, %v493, 0
      %v504 = vsel %vm281, %v490, 0
      %506 = vmatprep.subr.bf16.mxu0 %v501
      %507 = vmatpush1.bf16.msra.mxu0 %v498
      %508 = vmatprep.subr.bf16.mxu0 0
      %509 = vmatpush1.bf16.msra.mxu0 0
      %510 = vmatprep.subr.bf16.mxu0 0
      %511 = vmatpush1.bf16.msra.mxu0 0
      %512 = vmatprep.subr.bf16.mxu0 0
      %513 = vmatpush1.bf16.msra.mxu0 0
      %514 = vmatprep.subr.bf16.mxu0 0
      %515 = vmatpush1.bf16.msra.mxu0 0
      %516 = vmatprep.subr.bf16.mxu0 0
      %517 = vmatpush1.bf16.msra.mxu0 0
      %518 = vmatprep.subr.bf16.mxu0 0
      %519 = vmatpush1.bf16.msra.mxu0 0
      %520 = vmatprep.subr.bf16.mxu0 0
      %521 = vmatpush1.bf16.msra.mxu0 0
      %522 = vmatprep.subr.bf16.mxu0 0
      %523 = vmatpush1.bf16.msra.mxu0 0
      %524 = vmatprep.subr.bf16.mxu0 0
      %525 = vmatpush1.bf16.msra.mxu0 0
      %526 = vmatprep.subr.bf16.mxu0 0
      %527 = vmatpush1.bf16.msra.mxu0 0
      %528 = vmatprep.subr.bf16.mxu0 0
      %529 = vmatpush1.bf16.msra.mxu0 0
      %530 = vmatprep.subr.bf16.mxu0 0
      %531 = vmatpush1.bf16.msra.mxu0 0
      %532 = vmatprep.subr.bf16.mxu0 0
      %533 = vmatpush1.bf16.msra.mxu0 0
      %534 = vmatprep.subr.bf16.mxu0 0
      %535 = vmatpush1.bf16.msra.mxu0 0
      %536 = vmatprep.subr.bf16.mxu0 0
      %537 = vmatpush1.bf16.msra.mxu0 0
      %538 = vmatprep.mubr.bf16.mxu0 0
      %539 = vmatmul.mubr.bf16.gmra.mrb[0].mxu0 %v495
      %v540 = vpop.f32.mrb[0].mxu0
      %v541 = vadd.f32 0.0, %v540
      %v542 = vpop.f32.mrb[0].mxu0
      %v543 = vadd.f32 0.0, %v542
      %v544 = vpop.f32.mrb[0].mxu0
      %v545 = vpop.f32.mrb[0].mxu0
      %546 = vdwg.mxu0
      %547 = vmatprep.subr.bf16.mxu0 0
      %548 = vmatpush1.bf16.msra.mxu0 %v504
      %549 = vmatprep.subr.bf16.mxu0 0
      %550 = vmatpush1.bf16.msra.mxu0 0
      %551 = vmatprep.subr.bf16.mxu0 0
      %552 = vmatpush1.bf16.msra.mxu0 0
      %553 = vmatprep.subr.bf16.mxu0 0
      %554 = vmatpush1.bf16.msra.mxu0 0
      %555 = vmatprep.subr.bf16.mxu0 0
      %556 = vmatpush1.bf16.msra.mxu0 0
      %557 = vmatprep.subr.bf16.mxu0 0
      %558 = vmatpush1.bf16.msra.mxu0 0
      %559 = vmatprep.subr.bf16.mxu0 0
      %560 = vmatpush1.bf16.msra.mxu0 0
      %561 = vmatprep.subr.bf16.mxu0 0
      %562 = vmatpush1.bf16.msra.mxu0 0
      %563 = vmatprep.subr.bf16.mxu0 0
      %564 = vmatpush1.bf16.msra.mxu0 0
      %565 = vmatprep.subr.bf16.mxu0 0
      %566 = vmatpush1.bf16.msra.mxu0 0
      %567 = vmatprep.subr.bf16.mxu0 0
      %568 = vmatpush1.bf16.msra.mxu0 0
      %569 = vmatprep.subr.bf16.mxu0 0
      %570 = vmatpush1.bf16.msra.mxu0 0
      %571 = vmatprep.subr.bf16.mxu0 0
      %572 = vmatpush1.bf16.msra.mxu0 0
      %573 = vmatprep.subr.bf16.mxu0 0
      %574 = vmatpush1.bf16.msra.mxu0 0
      %575 = vmatprep.subr.bf16.mxu0 0
      %576 = vmatpush1.bf16.msra.mxu0 0
      %577 = vmatprep.subr.bf16.mxu0 0
      %578 = vmatpush1.bf16.msra.mxu0 0
      %579 = vmatprep.mubr.bf16.mxu0 0
      %580 = vmatmul.mubr.bf16.gmra.mrb[0].mxu0 %v495
      %v581 = vpop.f32.mrb[0].mxu0
      %v582 = vadd.f32 0.0, %v581
      %v583 = vpop.f32.mrb[0].mxu0
      %v584 = vpop.f32.mrb[0].mxu0
      %v585 = vpop.f32.mrb[0].mxu0
      %586 = vdwg.mxu0
      %v587 = vadd.f32 %v419, %v541
      %v588 = vadd.f32 %v421, %v543
      %v589 = vadd.f32 %v460, %v582
      %s590 = scalar_lea.vmem %s1, 12
      %v591 = vld [vmem:[%s590] sm:$0xf]
      %v592 = vld [vmem:[%s232] sm:$0x3f]
      %v594 = vcombine.high %v592, %v592
      %v596 = vunpack.c.l.s4 1983009808
      %v597 = vunpack.c.0.s8 %v596
      %v598 = vlaneseq
      %v599 = vshrl.u32 %v598, 7
      %v600 = vsub.s32 %v597, %v599
      %v601 = vrot.slane %v592, %v600
      %v603 = vunpack.c.l.s4 1983009808
      %v604 = vunpack.c.0.s8 %v603
      %v605 = vlaneseq
      %v606 = vshrl.u32 %v605, 7
      %v607 = vsub.s32 %v604, %v606
      %v608 = vrot.slane %v594, %v607
      %v609 = vcombine.high %v601, %v601
      %610 = vrot.lane.b32.xlu0 %v601, 110
      %v611 = vpop.permute.xlu0 %610
      %612 = vrot.lane.b32.xlu0 %v609, 110
      %v613 = vpop.permute.xlu0 %612
      %614 = vrot.lane.b32.xlu0 %v608, 110
      %v615 = vpop.permute.xlu0 %614
      %vm616 = vcmask 900096
      %v617 = vsel %vm616, %v611, %v613
      %v618 = vsel %vm616, %v613, %v615
      %v620 = vsel %vm277, %v591, 0
      %v623 = vsel %vm281, %v617, 0
      %v626 = vsel %vm281, %v618, 0
      %v629 = vsel %vm281, %v615, 0
      %631 = vmatprep.subr.bf16.mxu0 %v626
      %632 = vmatpush1.bf16.msra.mxu0 %v623
      %633 = vmatprep.subr.bf16.mxu0 0
      %634 = vmatpush1.bf16.msra.mxu0 0
      %635 = vmatprep.subr.bf16.mxu0 0
      %636 = vmatpush1.bf16.msra.mxu0 0
      %637 = vmatprep.subr.bf16.mxu0 0
      %638 = vmatpush1.bf16.msra.mxu0 0
      %639 = vmatprep.subr.bf16.mxu0 0
      %640 = vmatpush1.bf16.msra.mxu0 0
      %641 = vmatprep.subr.bf16.mxu0 0
      %642 = vmatpush1.bf16.msra.mxu0 0
      %643 = vmatprep.subr.bf16.mxu0 0
      %644 = vmatpush1.bf16.msra.mxu0 0
      %645 = vmatprep.subr.bf16.mxu0 0
      %646 = vmatpush1.bf16.msra.mxu0 0
      %647 = vmatprep.subr.bf16.mxu0 0
      %648 = vmatpush1.bf16.msra.mxu0 0
      %649 = vmatprep.subr.bf16.mxu0 0
      %650 = vmatpush1.bf16.msra.mxu0 0
      %651 = vmatprep.subr.bf16.mxu0 0
      %652 = vmatpush1.bf16.msra.mxu0 0
      %653 = vmatprep.subr.bf16.mxu0 0
      %654 = vmatpush1.bf16.msra.mxu0 0
      %655 = vmatprep.subr.bf16.mxu0 0
      %656 = vmatpush1.bf16.msra.mxu0 0
      %657 = vmatprep.subr.bf16.mxu0 0
      %658 = vmatpush1.bf16.msra.mxu0 0
      %659 = vmatprep.subr.bf16.mxu0 0
      %660 = vmatpush1.bf16.msra.mxu0 0
      %661 = vmatprep.subr.bf16.mxu0 0
      %662 = vmatpush1.bf16.msra.mxu0 0
      %663 = vmatprep.mubr.bf16.mxu0 0
      %664 = vmatmul.mubr.bf16.gmra.mrb[0].mxu0 %v620
      %v665 = vpop.f32.mrb[0].mxu0
      %v666 = vadd.f32 0.0, %v665
      %v667 = vpop.f32.mrb[0].mxu0
      %v668 = vadd.f32 0.0, %v667
      %v669 = vpop.f32.mrb[0].mxu0
      %v670 = vpop.f32.mrb[0].mxu0
      %671 = vdwg.mxu0
      %672 = vmatprep.subr.bf16.mxu0 0
      %673 = vmatpush1.bf16.msra.mxu0 %v629
      %674 = vmatprep.subr.bf16.mxu0 0
      %675 = vmatpush1.bf16.msra.mxu0 0
      %676 = vmatprep.subr.bf16.mxu0 0
      %677 = vmatpush1.bf16.msra.mxu0 0
      %678 = vmatprep.subr.bf16.mxu0 0
      %679 = vmatpush1.bf16.msra.mxu0 0
      %680 = vmatprep.subr.bf16.mxu0 0
      %681 = vmatpush1.bf16.msra.mxu0 0
      %682 = vmatprep.subr.bf16.mxu0 0
      %683 = vmatpush1.bf16.msra.mxu0 0
      %684 = vmatprep.subr.bf16.mxu0 0
      %685 = vmatpush1.bf16.msra.mxu0 0
      %686 = vmatprep.subr.bf16.mxu0 0
      %687 = vmatpush1.bf16.msra.mxu0 0
      %688 = vmatprep.subr.bf16.mxu0 0
      %689 = vmatpush1.bf16.msra.mxu0 0
      %690 = vmatprep.subr.bf16.mxu0 0
      %691 = vmatpush1.bf16.msra.mxu0 0
      %692 = vmatprep.subr.bf16.mxu0 0
      %693 = vmatpush1.bf16.msra.mxu0 0
      %694 = vmatprep.subr.bf16.mxu0 0
      %695 = vmatpush1.bf16.msra.mxu0 0
      %696 = vmatprep.subr.bf16.mxu0 0
      %697 = vmatpush1.bf16.msra.mxu0 0
      %698 = vmatprep.subr.bf16.mxu0 0
      %699 = vmatpush1.bf16.msra.mxu0 0
      %700 = vmatprep.subr.bf16.mxu0 0
      %701 = vmatpush1.bf16.msra.mxu0 0
      %702 = vmatprep.subr.bf16.mxu0 0
      %703 = vmatpush1.bf16.msra.mxu0 0
      %704 = vmatprep.mubr.bf16.mxu0 0
      %705 = vmatmul.mubr.bf16.gmra.mrb[0].mxu0 %v620
      %v706 = vpop.f32.mrb[0].mxu0
      %v707 = vadd.f32 0.0, %v706
      %v708 = vpop.f32.mrb[0].mxu0
      %v709 = vpop.f32.mrb[0].mxu0
      %v710 = vpop.f32.mrb[0].mxu0
      %711 = vdwg.mxu0
      %v712 = vadd.f32 %v587, %v666
      %v713 = vadd.f32 %v588, %v668
      %v714 = vadd.f32 %v589, %v707
      %s715 = scalar_lea.vmem %s1, 16
      %v716 = vld [vmem:[%s715] sm:$0xf]
      %v717 = vld [vmem:[%s232] sm:$0x3f]
      %v719 = vcombine.high %v717, %v717
      %v721 = vunpack.c.l.s4 1983009808
      %v722 = vunpack.c.0.s8 %v721
      %v723 = vlaneseq
      %v724 = vshrl.u32 %v723, 7
      %v725 = vsub.s32 %v722, %v724
      %v726 = vrot.slane %v717, %v725
      %v728 = vunpack.c.l.s4 1983009808
      %v729 = vunpack.c.0.s8 %v728
      %v730 = vlaneseq
      %v731 = vshrl.u32 %v730, 7
      %v732 = vsub.s32 %v729, %v731
      %v733 = vrot.slane %v719, %v732
      %v734 = vcombine.high %v726, %v726
      %735 = vrot.lane.b32.xlu0 %v726, 109
      %v736 = vpop.permute.xlu0 %735
      %737 = vrot.lane.b32.xlu0 %v734, 109
      %v738 = vpop.permute.xlu0 %737
      %739 = vrot.lane.b32.xlu0 %v733, 109
      %v740 = vpop.permute.xlu0 %739
      %vm741 = vcmask 891904
      %v742 = vsel %vm741, %v736, %v738
      %v743 = vsel %vm741, %v738, %v740
      %v745 = vsel %vm277, %v716, 0
      %v748 = vsel %vm281, %v742, 0
      %v751 = vsel %vm281, %v743, 0
      %v754 = vsel %vm281, %v740, 0
      %756 = vmatprep.subr.bf16.mxu0 %v751
      %757 = vmatpush1.bf16.msra.mxu0 %v748
      %758 = vmatprep.subr.bf16.mxu0 0
      %759 = vmatpush1.bf16.msra.mxu0 0
      %760 = vmatprep.subr.bf16.mxu0 0
      %761 = vmatpush1.bf16.msra.mxu0 0
      %762 = vmatprep.subr.bf16.mxu0 0
      %763 = vmatpush1.bf16.msra.mxu0 0
      %764 = vmatprep.subr.bf16.mxu0 0
      %765 = vmatpush1.bf16.msra.mxu0 0
      %766 = vmatprep.subr.bf16.mxu0 0
      %767 = vmatpush1.bf16.msra.mxu0 0
      %768 = vmatprep.subr.bf16.mxu0 0
      %769 = vmatpush1.bf16.msra.mxu0 0
      %770 = vmatprep.subr.bf16.mxu0 0
      %771 = vmatpush1.bf16.msra.mxu0 0
      %772 = vmatprep.subr.bf16.mxu0 0
      %773 = vmatpush1.bf16.msra.mxu0 0
      %774 = vmatprep.subr.bf16.mxu0 0
      %775 = vmatpush1.bf16.msra.mxu0 0
      %776 = vmatprep.subr.bf16.mxu0 0
      %777 = vmatpush1.bf16.msra.mxu0 0
      %778 = vmatprep.subr.bf16.mxu0 0
      %779 = vmatpush1.bf16.msra.mxu0 0
      %780 = vmatprep.subr.bf16.mxu0 0
      %781 = vmatpush1.bf16.msra.mxu0 0
      %782 = vmatprep.subr.bf16.mxu0 0
      %783 = vmatpush1.bf16.msra.mxu0 0
      %784 = vmatprep.subr.bf16.mxu0 0
      %785 = vmatpush1.bf16.msra.mxu0 0
      %786 = vmatprep.subr.bf16.mxu0 0
      %787 = vmatpush1.bf16.msra.mxu0 0
      %788 = vmatprep.mubr.bf16.mxu0 0
      %789 = vmatmul.mubr.bf16.gmra.mrb[0].mxu0 %v745
      %v790 = vpop.f32.mrb[0].mxu0
      %v791 = vadd.f32 0.0, %v790
      %v792 = vpop.f32.mrb[0].mxu0
      %v793 = vadd.f32 0.0, %v792
      %v794 = vpop.f32.mrb[0].mxu0
      %v795 = vpop.f32.mrb[0].mxu0
      %796 = vdwg.mxu0
      %797 = vmatprep.subr.bf16.mxu0 0
      %798 = vmatpush1.bf16.msra.mxu0 %v754
      %799 = vmatprep.subr.bf16.mxu0 0
      %800 = vmatpush1.bf16.msra.mxu0 0
      %801 = vmatprep.subr.bf16.mxu0 0
      %802 = vmatpush1.bf16.msra.mxu0 0
      %803 = vmatprep.subr.bf16.mxu0 0
      %804 = vmatpush1.bf16.msra.mxu0 0
      %805 = vmatprep.subr.bf16.mxu0 0
      %806 = vmatpush1.bf16.msra.mxu0 0
      %807 = vmatprep.subr.bf16.mxu0 0
      %808 = vmatpush1.bf16.msra.mxu0 0
      %809 = vmatprep.subr.bf16.mxu0 0
      %810 = vmatpush1.bf16.msra.mxu0 0
      %811 = vmatprep.subr.bf16.mxu0 0
      %812 = vmatpush1.bf16.msra.mxu0 0
      %813 = vmatprep.subr.bf16.mxu0 0
      %814 = vmatpush1.bf16.msra.mxu0 0
      %815 = vmatprep.subr.bf16.mxu0 0
      %816 = vmatpush1.bf16.msra.mxu0 0
      %817 = vmatprep.subr.bf16.mxu0 0
      %818 = vmatpush1.bf16.msra.mxu0 0
      %819 = vmatprep.subr.bf16.mxu0 0
      %820 = vmatpush1.bf16.msra.mxu0 0
      %821 = vmatprep.subr.bf16.mxu0 0
      %822 = vmatpush1.bf16.msra.mxu0 0
      %823 = vmatprep.subr.bf16.mxu0 0
      %824 = vmatpush1.bf16.msra.mxu0 0
      %825 = vmatprep.subr.bf16.mxu0 0
      %826 = vmatpush1.bf16.msra.mxu0 0
      %827 = vmatprep.subr.bf16.mxu0 0
      %828 = vmatpush1.bf16.msra.mxu0 0
      %829 = vmatprep.mubr.bf16.mxu0 0
      %830 = vmatmul.mubr.bf16.gmra.mrb[0].mxu0 %v745
      %v831 = vpop.f32.mrb[0].mxu0
      %v832 = vadd.f32 0.0, %v831
      %v833 = vpop.f32.mrb[0].mxu0
      %v834 = vpop.f32.mrb[0].mxu0
      %v835 = vpop.f32.mrb[0].mxu0
      %836 = vdwg.mxu0
      %v837 = vadd.f32 %v712, %v791
      %v838 = vadd.f32 %v713, %v793
      %v839 = vadd.f32 %v714, %v832
      %s840 = scalar_lea.vmem %s1, 20
      %v841 = vld [vmem:[%s840] sm:$0xf]
      %v842 = vld [vmem:[%s232] sm:$0x3f]
      %v844 = vcombine.high %v842, %v842
      %v846 = vunpack.c.l.s4 1983009808
      %v847 = vunpack.c.0.s8 %v846
      %v848 = vlaneseq
      %v849 = vshrl.u32 %v848, 7
      %v850 = vsub.s32 %v847, %v849
      %v851 = vrot.slane %v842, %v850
      %v853 = vunpack.c.l.s4 1983009808
      %v854 = vunpack.c.0.s8 %v853
      %v855 = vlaneseq
      %v856 = vshrl.u32 %v855, 7
      %v857 = vsub.s32 %v854, %v856
      %v858 = vrot.slane %v844, %v857
      %v859 = vcombine.high %v851, %v851
      %860 = vrot.lane.b32.xlu0 %v851, 108
      %v861 = vpop.permute.xlu0 %860
      %862 = vrot.lane.b32.xlu0 %v859, 108
      %v863 = vpop.permute.xlu0 %862
      %864 = vrot.lane.b32.xlu0 %v858, 108
      %v865 = vpop.permute.xlu0 %864
      %vm866 = vcmask 883712
      %v867 = vsel %vm866, %v861, %v863
      %v868 = vsel %vm866, %v863, %v865
      %v870 = vsel %vm277, %v841, 0
      %v873 = vsel %vm281, %v867, 0
      %v876 = vsel %vm281, %v868, 0
      %v879 = vsel %vm281, %v865, 0
      %881 = vmatprep.subr.bf16.mxu0 %v876
      %882 = vmatpush1.bf16.msra.mxu0 %v873
      %883 = vmatprep.subr.bf16.mxu0 0
      %884 = vmatpush1.bf16.msra.mxu0 0
      %885 = vmatprep.subr.bf16.mxu0 0
      %886 = vmatpush1.bf16.msra.mxu0 0
      %887 = vmatprep.subr.bf16.mxu0 0
      %888 = vmatpush1.bf16.msra.mxu0 0
      %889 = vmatprep.subr.bf16.mxu0 0
      %890 = vmatpush1.bf16.msra.mxu0 0
      %891 = vmatprep.subr.bf16.mxu0 0
      %892 = vmatpush1.bf16.msra.mxu0 0
      %893 = vmatprep.subr.bf16.mxu0 0
      %894 = vmatpush1.bf16.msra.mxu0 0
      %895 = vmatprep.subr.bf16.mxu0 0
      %896 = vmatpush1.bf16.msra.mxu0 0
      %897 = vmatprep.subr.bf16.mxu0 0
      %898 = vmatpush1.bf16.msra.mxu0 0
      %899 = vmatprep.subr.bf16.mxu0 0
      %900 = vmatpush1.bf16.msra.mxu0 0
      %901 = vmatprep.subr.bf16.mxu0 0
      %902 = vmatpush1.bf16.msra.mxu0 0
      %903 = vmatprep.subr.bf16.mxu0 0
      %904 = vmatpush1.bf16.msra.mxu0 0
      %905 = vmatprep.subr.bf16.mxu0 0
      %906 = vmatpush1.bf16.msra.mxu0 0
      %907 = vmatprep.subr.bf16.mxu0 0
      %908 = vmatpush1.bf16.msra.mxu0 0
      %909 = vmatprep.subr.bf16.mxu0 0
      %910 = vmatpush1.bf16.msra.mxu0 0
      %911 = vmatprep.subr.bf16.mxu0 0
      %912 = vmatpush1.bf16.msra.mxu0 0
      %913 = vmatprep.mubr.bf16.mxu0 0
      %914 = vmatmul.mubr.bf16.gmra.mrb[0].mxu0 %v870
      %v915 = vpop.f32.mrb[0].mxu0
      %v916 = vadd.f32 0.0, %v915
      %v917 = vpop.f32.mrb[0].mxu0
      %v918 = vadd.f32 0.0, %v917
      %v919 = vpop.f32.mrb[0].mxu0
      %v920 = vpop.f32.mrb[0].mxu0
      %921 = vdwg.mxu0
      %922 = vmatprep.subr.bf16.mxu0 0
      %923 = vmatpush1.bf16.msra.mxu0 %v879
      %924 = vmatprep.subr.bf16.mxu0 0
      %925 = vmatpush1.bf16.msra.mxu0 0
      %926 = vmatprep.subr.bf16.mxu0 0
      %927 = vmatpush1.bf16.msra.mxu0 0
      %928 = vmatprep.subr.bf16.mxu0 0
      %929 = vmatpush1.bf16.msra.mxu0 0
      %930 = vmatprep.subr.bf16.mxu0 0
      %931 = vmatpush1.bf16.msra.mxu0 0
      %932 = vmatprep.subr.bf16.mxu0 0
      %933 = vmatpush1.bf16.msra.mxu0 0
      %934 = vmatprep.subr.bf16.mxu0 0
      %935 = vmatpush1.bf16.msra.mxu0 0
      %936 = vmatprep.subr.bf16.mxu0 0
      %937 = vmatpush1.bf16.msra.mxu0 0
      %938 = vmatprep.subr.bf16.mxu0 0
      %939 = vmatpush1.bf16.msra.mxu0 0
      %940 = vmatprep.subr.bf16.mxu0 0
      %941 = vmatpush1.bf16.msra.mxu0 0
      %942 = vmatprep.subr.bf16.mxu0 0
      %943 = vmatpush1.bf16.msra.mxu0 0
      %944 = vmatprep.subr.bf16.mxu0 0
      %945 = vmatpush1.bf16.msra.mxu0 0
      %946 = vmatprep.subr.bf16.mxu0 0
      %947 = vmatpush1.bf16.msra.mxu0 0
      %948 = vmatprep.subr.bf16.mxu0 0
      %949 = vmatpush1.bf16.msra.mxu0 0
      %950 = vmatprep.subr.bf16.mxu0 0
      %951 = vmatpush1.bf16.msra.mxu0 0
      %952 = vmatprep.subr.bf16.mxu0 0
      %953 = vmatpush1.bf16.msra.mxu0 0
      %954 = vmatprep.mubr.bf16.mxu0 0
      %955 = vmatmul.mubr.bf16.gmra.mrb[0].mxu0 %v870
      %v956 = vpop.f32.mrb[0].mxu0
      %v957 = vadd.f32 0.0, %v956
      %v958 = vpop.f32.mrb[0].mxu0
      %v959 = vpop.f32.mrb[0].mxu0
      %v960 = vpop.f32.mrb[0].mxu0
      %961 = vdwg.mxu0
      %v962 = vadd.f32 %v837, %v916
      %v963 = vadd.f32 %v838, %v918
      %v964 = vadd.f32 %v839, %v957
      %s965 = scalar_lea.vmem %s1, 24
      %v966 = vld [vmem:[%s965] sm:$0xf]
      %v967 = vld [vmem:[%s232] sm:$0x3f]
      %v969 = vcombine.high %v967, %v967
      %v971 = vunpack.c.l.s4 1983009808
      %v972 = vunpack.c.0.s8 %v971
      %v973 = vlaneseq
      %v974 = vshrl.u32 %v973, 7
      %v975 = vsub.s32 %v972, %v974
      %v976 = vrot.slane %v967, %v975
      %v978 = vunpack.c.l.s4 1983009808
      %v979 = vunpack.c.0.s8 %v978
      %v980 = vlaneseq
      %v981 = vshrl.u32 %v980, 7
      %v982 = vsub.s32 %v979, %v981
      %v983 = vrot.slane %v969, %v982
      %v984 = vcombine.high %v976, %v976
      %985 = vrot.lane.b32.xlu0 %v976, 92
      %v986 = vpop.permute.xlu0 %985
      %987 = vrot.lane.b32.xlu0 %v984, 92
      %v988 = vpop.permute.xlu0 %987
      %989 = vrot.lane.b32.xlu0 %v983, 92
      %v990 = vpop.permute.xlu0 %989
      %vm991 = vcmask 752640
      %v992 = vsel %vm991, %v986, %v988
      %v993 = vsel %vm991, %v988, %v990
      %v995 = vsel %vm277, %v966, 0
      %v998 = vsel %vm281, %v992, 0
      %v1001 = vsel %vm281, %v993, 0
      %v1004 = vsel %vm281, %v990, 0
      %1006 = vmatprep.subr.bf16.mxu0 %v1001
      %1007 = vmatpush1.bf16.msra.mxu0 %v998
      %1008 = vmatprep.subr.bf16.mxu0 0
      %1009 = vmatpush1.bf16.msra.mxu0 0
      %1010 = vmatprep.subr.bf16.mxu0 0
      %1011 = vmatpush1.bf16.msra.mxu0 0
      %1012 = vmatprep.subr.bf16.mxu0 0
      %1013 = vmatpush1.bf16.msra.mxu0 0
      %1014 = vmatprep.subr.bf16.mxu0 0
      %1015 = vmatpush1.bf16.msra.mxu0 0
      %1016 = vmatprep.subr.bf16.mxu0 0
      %1017 = vmatpush1.bf16.msra.mxu0 0
      %1018 = vmatprep.subr.bf16.mxu0 0
      %1019 = vmatpush1.bf16.msra.mxu0 0
      %1020 = vmatprep.subr.bf16.mxu0 0
      %1021 = vmatpush1.bf16.msra.mxu0 0
      %1022 = vmatprep.subr.bf16.mxu0 0
      %1023 = vmatpush1.bf16.msra.mxu0 0
      %1024 = vmatprep.subr.bf16.mxu0 0
      %1025 = vmatpush1.bf16.msra.mxu0 0
      %1026 = vmatprep.subr.bf16.mxu0 0
      %1027 = vmatpush1.bf16.msra.mxu0 0
      %1028 = vmatprep.subr.bf16.mxu0 0
      %1029 = vmatpush1.bf16.msra.mxu0 0
      %1030 = vmatprep.subr.bf16.mxu0 0
      %1031 = vmatpush1.bf16.msra.mxu0 0
      %1032 = vmatprep.subr.bf16.mxu0 0
      %1033 = vmatpush1.bf16.msra.mxu0 0
      %1034 = vmatprep.subr.bf16.mxu0 0
      %1035 = vmatpush1.bf16.msra.mxu0 0
      %1036 = vmatprep.subr.bf16.mxu0 0
      %1037 = vmatpush1.bf16.msra.mxu0 0
      %1038 = vmatprep.mubr.bf16.mxu0 0
      %1039 = vmatmul.mubr.bf16.gmra.mrb[0].mxu0 %v995
      %v1040 = vpop.f32.mrb[0].mxu0
      %v1041 = vadd.f32 0.0, %v1040
      %v1042 = vpop.f32.mrb[0].mxu0
      %v1043 = vadd.f32 0.0, %v1042
      %v1044 = vpop.f32.mrb[0].mxu0
      %v1045 = vpop.f32.mrb[0].mxu0
      %1046 = vdwg.mxu0
      %1047 = vmatprep.subr.bf16.mxu0 0
      %1048 = vmatpush1.bf16.msra.mxu0 %v1004
      %1049 = vmatprep.subr.bf16.mxu0 0
      %1050 = vmatpush1.bf16.msra.mxu0 0
      %1051 = vmatprep.subr.bf16.mxu0 0
      %1052 = vmatpush1.bf16.msra.mxu0 0
      %1053 = vmatprep.subr.bf16.mxu0 0
      %1054 = vmatpush1.bf16.msra.mxu0 0
      %1055 = vmatprep.subr.bf16.mxu0 0
      %1056 = vmatpush1.bf16.msra.mxu0 0
      %1057 = vmatprep.subr.bf16.mxu0 0
      %1058 = vmatpush1.bf16.msra.mxu0 0
      %1059 = vmatprep.subr.bf16.mxu0 0
      %1060 = vmatpush1.bf16.msra.mxu0 0
      %1061 = vmatprep.subr.bf16.mxu0 0
      %1062 = vmatpush1.bf16.msra.mxu0 0
      %1063 = vmatprep.subr.bf16.mxu0 0
      %1064 = vmatpush1.bf16.msra.mxu0 0
      %1065 = vmatprep.subr.bf16.mxu0 0
      %1066 = vmatpush1.bf16.msra.mxu0 0
      %1067 = vmatprep.subr.bf16.mxu0 0
      %1068 = vmatpush1.bf16.msra.mxu0 0
      %1069 = vmatprep.subr.bf16.mxu0 0
      %1070 = vmatpush1.bf16.msra.mxu0 0
      %1071 = vmatprep.subr.bf16.mxu0 0
      %1072 = vmatpush1.bf16.msra.mxu0 0
      %1073 = vmatprep.subr.bf16.mxu0 0
      %1074 = vmatpush1.bf16.msra.mxu0 0
      %1075 = vmatprep.subr.bf16.mxu0 0
      %1076 = vmatpush1.bf16.msra.mxu0 0
      %1077 = vmatprep.subr.bf16.mxu0 0
      %1078 = vmatpush1.bf16.msra.mxu0 0
      %1079 = vmatprep.mubr.bf16.mxu0 0
      %1080 = vmatmul.mubr.bf16.gmra.mrb[0].mxu0 %v995
      %v1081 = vpop.f32.mrb[0].mxu0
      %v1082 = vadd.f32 0.0, %v1081
      %v1083 = vpop.f32.mrb[0].mxu0
      %v1084 = vpop.f32.mrb[0].mxu0
      %v1085 = vpop.f32.mrb[0].mxu0
      %1086 = vdwg.mxu0
      %v1087 = vadd.f32 %v962, %v1041
      %v1088 = vadd.f32 %v963, %v1043
      %v1089 = vadd.f32 %v964, %v1082
      %s1090 = scalar_lea.vmem %s1, 28
      %v1091 = vld [vmem:[%s1090] sm:$0xf]
      %v1092 = vld [vmem:[%s232] sm:$0x3f]
      %v1094 = vcombine.high %v1092, %v1092
      %v1096 = vunpack.c.l.s4 1983009808
      %v1097 = vunpack.c.0.s8 %v1096
      %v1098 = vlaneseq
      %v1099 = vshrl.u32 %v1098, 7
      %v1100 = vsub.s32 %v1097, %v1099
      %v1101 = vrot.slane %v1092, %v1100
      %v1103 = vunpack.c.l.s4 1983009808
      %v1104 = vunpack.c.0.s8 %v1103
      %v1105 = vlaneseq
      %v1106 = vshrl.u32 %v1105, 7
      %v1107 = vsub.s32 %v1104, %v1106
      %v1108 = vrot.slane %v1094, %v1107
      %v1109 = vcombine.high %v1101, %v1101
      %1110 = vrot.lane.b32.xlu0 %v1101, 91
      %v1111 = vpop.permute.xlu0 %1110
      %1112 = vrot.lane.b32.xlu0 %v1109, 91
      %v1113 = vpop.permute.xlu0 %1112
      %1114 = vrot.lane.b32.xlu0 %v1108, 91
      %v1115 = vpop.permute.xlu0 %1114
      %vm1116 = vcmask 744448
      %v1117 = vsel %vm1116, %v1111, %v1113
      %v1118 = vsel %vm1116, %v1113, %v1115
      %v1120 = vsel %vm277, %v1091, 0
      %v1123 = vsel %vm281, %v1117, 0
      %v1126 = vsel %vm281, %v1118, 0
      %v1129 = vsel %vm281, %v1115, 0
      %1131 = vmatprep.subr.bf16.mxu0 %v1126
      %1132 = vmatpush1.bf16.msra.mxu0 %v1123
      %1133 = vmatprep.subr.bf16.mxu0 0
      %1134 = vmatpush1.bf16.msra.mxu0 0
      %1135 = vmatprep.subr.bf16.mxu0 0
      %1136 = vmatpush1.bf16.msra.mxu0 0
      %1137 = vmatprep.subr.bf16.mxu0 0
      %1138 = vmatpush1.bf16.msra.mxu0 0
      %1139 = vmatprep.subr.bf16.mxu0 0
      %1140 = vmatpush1.bf16.msra.mxu0 0
      %1141 = vmatprep.subr.bf16.mxu0 0
      %1142 = vmatpush1.bf16.msra.mxu0 0
      %1143 = vmatprep.subr.bf16.mxu0 0
      %1144 = vmatpush1.bf16.msra.mxu0 0
      %1145 = vmatprep.subr.bf16.mxu0 0
      %1146 = vmatpush1.bf16.msra.mxu0 0
      %1147 = vmatprep.subr.bf16.mxu0 0
      %1148 = vmatpush1.bf16.msra.mxu0 0
      %1149 = vmatprep.subr.bf16.mxu0 0
      %1150 = vmatpush1.bf16.msra.mxu0 0
      %1151 = vmatprep.subr.bf16.mxu0 0
      %1152 = vmatpush1.bf16.msra.mxu0 0
      %1153 = vmatprep.subr.bf16.mxu0 0
      %1154 = vmatpush1.bf16.msra.mxu0 0
      %1155 = vmatprep.subr.bf16.mxu0 0
      %1156 = vmatpush1.bf16.msra.mxu0 0
      %1157 = vmatprep.subr.bf16.mxu0 0
      %1158 = vmatpush1.bf16.msra.mxu0 0
      %1159 = vmatprep.subr.bf16.mxu0 0
      %1160 = vmatpush1.bf16.msra.mxu0 0
      %1161 = vmatprep.subr.bf16.mxu0 0
      %1162 = vmatpush1.bf16.msra.mxu0 0
      %1163 = vmatprep.mubr.bf16.mxu0 0
      %1164 = vmatmul.mubr.bf16.gmra.mrb[0].mxu0 %v1120
      %v1165 = vpop.f32.mrb[0].mxu0
      %v1166 = vadd.f32 0.0, %v1165
      %v1167 = vpop.f32.mrb[0].mxu0
      %v1168 = vadd.f32 0.0, %v1167
      %v1169 = vpop.f32.mrb[0].mxu0
      %v1170 = vpop.f32.mrb[0].mxu0
      %1171 = vdwg.mxu0
      %1172 = vmatprep.subr.bf16.mxu0 0
      %1173 = vmatpush1.bf16.msra.mxu0 %v1129
      %1174 = vmatprep.subr.bf16.mxu0 0
      %1175 = vmatpush1.bf16.msra.mxu0 0
      %1176 = vmatprep.subr.bf16.mxu0 0
      %1177 = vmatpush1.bf16.msra.mxu0 0
      %1178 = vmatprep.subr.bf16.mxu0 0
      %1179 = vmatpush1.bf16.msra.mxu0 0
      %1180 = vmatprep.subr.bf16.mxu0 0
      %1181 = vmatpush1.bf16.msra.mxu0 0
      %1182 = vmatprep.subr.bf16.mxu0 0
      %1183 = vmatpush1.bf16.msra.mxu0 0
      %1184 = vmatprep.subr.bf16.mxu0 0
      %1185 = vmatpush1.bf16.msra.mxu0 0
      %1186 = vmatprep.subr.bf16.mxu0 0
      %1187 = vmatpush1.bf16.msra.mxu0 0
      %1188 = vmatprep.subr.bf16.mxu0 0
      %1189 = vmatpush1.bf16.msra.mxu0 0
      %1190 = vmatprep.subr.bf16.mxu0 0
      %1191 = vmatpush1.bf16.msra.mxu0 0
      %1192 = vmatprep.subr.bf16.mxu0 0
      %1193 = vmatpush1.bf16.msra.mxu0 0
      %1194 = vmatprep.subr.bf16.mxu0 0
      %1195 = vmatpush1.bf16.msra.mxu0 0
      %1196 = vmatprep.subr.bf16.mxu0 0
      %1197 = vmatpush1.bf16.msra.mxu0 0
      %1198 = vmatprep.subr.bf16.mxu0 0
      %1199 = vmatpush1.bf16.msra.mxu0 0
      %1200 = vmatprep.subr.bf16.mxu0 0
      %1201 = vmatpush1.bf16.msra.mxu0 0
      %1202 = vmatprep.subr.bf16.mxu0 0
      %1203 = vmatpush1.bf16.msra.mxu0 0
      %1204 = vmatprep.mubr.bf16.mxu0 0
      %1205 = vmatmul.mubr.bf16.gmra.mrb[0].mxu0 %v1120
      %v1206 = vpop.f32.mrb[0].mxu0
      %v1207 = vadd.f32 0.0, %v1206
      %v1208 = vpop.f32.mrb[0].mxu0
      %v1209 = vpop.f32.mrb[0].mxu0
      %v1210 = vpop.f32.mrb[0].mxu0
      %1211 = vdwg.mxu0
      %v1212 = vadd.f32 %v1087, %v1166
      %v1213 = vadd.f32 %v1088, %v1168
      %v1214 = vadd.f32 %v1089, %v1207
      %s1215 = scalar_lea.vmem %s1, 32
      %v1216 = vld [vmem:[%s1215] sm:$0xf]
      %v1217 = vld [vmem:[%s232] sm:$0x3f]
      %v1219 = vcombine.high %v1217, %v1217
      %v1221 = vunpack.c.l.s4 1983009808
      %v1222 = vunpack.c.0.s8 %v1221
      %v1223 = vlaneseq
      %v1224 = vshrl.u32 %v1223, 7
      %v1225 = vsub.s32 %v1222, %v1224
      %v1226 = vrot.slane %v1217, %v1225
      %v1228 = vunpack.c.l.s4 1983009808
      %v1229 = vunpack.c.0.s8 %v1228
      %v1230 = vlaneseq
      %v1231 = vshrl.u32 %v1230, 7
      %v1232 = vsub.s32 %v1229, %v1231
      %v1233 = vrot.slane %v1219, %v1232
      %v1234 = vcombine.high %v1226, %v1226
      %1235 = vrot.lane.b32.xlu0 %v1226, 90
      %v1236 = vpop.permute.xlu0 %1235
      %1237 = vrot.lane.b32.xlu0 %v1234, 90
      %v1238 = vpop.permute.xlu0 %1237
      %1239 = vrot.lane.b32.xlu0 %v1233, 90
      %v1240 = vpop.permute.xlu0 %1239
      %vm1241 = vcmask 736256
      %v1242 = vsel %vm1241, %v1236, %v1238
      %v1243 = vsel %vm1241, %v1238, %v1240
      %v1245 = vsel %vm277, %v1216, 0
      %v1248 = vsel %vm281, %v1242, 0
      %v1251 = vsel %vm281, %v1243, 0
      %v1254 = vsel %vm281, %v1240, 0
      %1256 = vmatprep.subr.bf16.mxu0 %v1251
      %1257 = vmatpush1.bf16.msra.mxu0 %v1248
      %1258 = vmatprep.subr.bf16.mxu0 0
      %1259 = vmatpush1.bf16.msra.mxu0 0
      %1260 = vmatprep.subr.bf16.mxu0 0
      %1261 = vmatpush1.bf16.msra.mxu0 0
      %1262 = vmatprep.subr.bf16.mxu0 0
      %1263 = vmatpush1.bf16.msra.mxu0 0
      %1264 = vmatprep.subr.bf16.mxu0 0
      %1265 = vmatpush1.bf16.msra.mxu0 0
      %1266 = vmatprep.subr.bf16.mxu0 0
      %1267 = vmatpush1.bf16.msra.mxu0 0
      %1268 = vmatprep.subr.bf16.mxu0 0
      %1269 = vmatpush1.bf16.msra.mxu0 0
      %1270 = vmatprep.subr.bf16.mxu0 0
      %1271 = vmatpush1.bf16.msra.mxu0 0
      %1272 = vmatprep.subr.bf16.mxu0 0
      %1273 = vmatpush1.bf16.msra.mxu0 0
      %1274 = vmatprep.subr.bf16.mxu0 0
      %1275 = vmatpush1.bf16.msra.mxu0 0
      %1276 = vmatprep.subr.bf16.mxu0 0
      %1277 = vmatpush1.bf16.msra.mxu0 0
      %1278 = vmatprep.subr.bf16.mxu0 0
      %1279 = vmatpush1.bf16.msra.mxu0 0
      %1280 = vmatprep.subr.bf16.mxu0 0
      %1281 = vmatpush1.bf16.msra.mxu0 0
      %1282 = vmatprep.subr.bf16.mxu0 0
      %1283 = vmatpush1.bf16.msra.mxu0 0
      %1284 = vmatprep.subr.bf16.mxu0 0
      %1285 = vmatpush1.bf16.msra.mxu0 0
      %1286 = vmatprep.subr.bf16.mxu0 0
      %1287 = vmatpush1.bf16.msra.mxu0 0
      %1288 = vmatprep.mubr.bf16.mxu0 0
      %1289 = vmatmul.mubr.bf16.gmra.mrb[0].mxu0 %v1245
      %v1290 = vpop.f32.mrb[0].mxu0
      %v1291 = vadd.f32 0.0, %v1290
      %v1292 = vpop.f32.mrb[0].mxu0
      %v1293 = vadd.f32 0.0, %v1292
      %v1294 = vpop.f32.mrb[0].mxu0
      %v1295 = vpop.f32.mrb[0].mxu0
      %1296 = vdwg.mxu0
      %1297 = vmatprep.subr.bf16.mxu0 0
      %1298 = vmatpush1.bf16.msra.mxu0 %v1254
      %1299 = vmatprep.subr.bf16.mxu0 0
      %1300 = vmatpush1.bf16.msra.mxu0 0
      %1301 = vmatprep.subr.bf16.mxu0 0
      %1302 = vmatpush1.bf16.msra.mxu0 0
      %1303 = vmatprep.subr.bf16.mxu0 0
      %1304 = vmatpush1.bf16.msra.mxu0 0
      %1305 = vmatprep.subr.bf16.mxu0 0
      %1306 = vmatpush1.bf16.msra.mxu0 0
      %1307 = vmatprep.subr.bf16.mxu0 0
      %1308 = vmatpush1.bf16.msra.mxu0 0
      %1309 = vmatprep.subr.bf16.mxu0 0
      %1310 = vmatpush1.bf16.msra.mxu0 0
      %1311 = vmatprep.subr.bf16.mxu0 0
      %1312 = vmatpush1.bf16.msra.mxu0 0
      %1313 = vmatprep.subr.bf16.mxu0 0
      %1314 = vmatpush1.bf16.msra.mxu0 0
      %1315 = vmatprep.subr.bf16.mxu0 0
      %1316 = vmatpush1.bf16.msra.mxu0 0
      %1317 = vmatprep.subr.bf16.mxu0 0
      %1318 = vmatpush1.bf16.msra.mxu0 0
      %1319 = vmatprep.subr.bf16.mxu0 0
      %1320 = vmatpush1.bf16.msra.mxu0 0
      %1321 = vmatprep.subr.bf16.mxu0 0
      %1322 = vmatpush1.bf16.msra.mxu0 0
      %1323 = vmatprep.subr.bf16.mxu0 0
      %1324 = vmatpush1.bf16.msra.mxu0 0
      %1325 = vmatprep.subr.bf16.mxu0 0
      %1326 = vmatpush1.bf16.msra.mxu0 0
      %1327 = vmatprep.subr.bf16.mxu0 0
      %1328 = vmatpush1.bf16.msra.mxu0 0
      %1329 = vmatprep.mubr.bf16.mxu0 0
      %1330 = vmatmul.mubr.bf16.gmra.mrb[0].mxu0 %v1245
      %v1331 = vpop.f32.mrb[0].mxu0
      %v1332 = vadd.f32 0.0, %v1331
      %v1333 = vpop.f32.mrb[0].mxu0
      %v1334 = vpop.f32.mrb[0].mxu0
      %v1335 = vpop.f32.mrb[0].mxu0
      %1336 = vdwg.mxu0
      %v1337 = vadd.f32 %v1212, %v1291
      %v1338 = vadd.f32 %v1213, %v1293
      %v1339 = vadd.f32 %v1214, %v1332
      %1340 = vst [vmem:[%s237] sm:$0xff] %v1337
      %1341 = vst [vmem:[%s237 + $0x8] sm:$0xff] %v1338
      %vm1342 = vcmask 244736
      %1343 = vst.msk [vmem:[%s237 + $0x10] sm:$0xff] %vm1342, %v1339
      %v1344 = vld [vmem:[%s2] sm:$0x7]
      %v1346 = vlaneseq
      %v1347 = vshrl.u32 %v1346, 7
      %v1348 = vsub.s32 0, %v1347
      %v1349 = vrot.slane %v1344, %v1348
      %v1350 = vlaneseq
      %v1351 = vshrl.u32 %v1350, 7
      %v1352 = vsub.s32 1, %v1351
      %v1353 = vrot.slane %v1344, %v1352
      %v1354 = vlaneseq
      %v1355 = vshrl.u32 %v1354, 7
      %v1356 = vsub.s32 2, %v1355
      %v1357 = vrot.slane %v1344, %v1356
      %v1361 = vmul.f32 %v1337, %v1349
      %v1362 = vmul.f32 %v1338, %v1353
      %v1363 = vmul.f32 %v1339, %v1357
      %v1364 = vadd.f32 %v1361, %v1362
      %v1365 = vsel %vm1342, %v1363, 0.0
      %v1366 = vadd.f32 %v1364, %v1365
      %1367 = vadd.xlane.f32.xlu0 %v1366
      %v1368 = vpop.xlane.xlu0 %1367
      %vm1369 = vcmask 7168
      %1370 = vst.msk [vmem:[%s241] sm:$0xff] %vm1369, %v1368
      %v1371 = vmul.f32 %v1361, %v1337
      %v1372 = vmul.f32 %v1362, %v1338
      %v1373 = vmul.f32 %v1363, %v1339
      %v1374 = vadd.f32 %v1371, %v1372
      %v1375 = vsel %vm1342, %v1373, 0.0
      %v1376 = vadd.f32 %v1374, %v1375
      %1377 = vadd.xlane.f32.xlu0 %v1376
      %v1378 = vpop.xlane.xlu0 %1377
      %1379 = vst.msk [vmem:[%s245] sm:$0xff] %vm1369, %v1378
      %p1380 = scmp.lt.s32.totalorder %s17, 1
      %s1381 = scalar_select %p1380, %s17, 1
      %s1382 = smul.addr %s1381, 3
      %s1383 = smul.addr %s1382, 8
      %s1384 = scalar_lea.vmem %s3, %s1383
      %p1385 = scmp.lt.s32.totalorder %s17, 1
      %s1386 = scalar_select %p1385, %s17, 1
      %s1387 = smul.addr %s1386, 8
      %s1388 = scalar_lea.vmem %s4, %s1387
      %p1389 = scmp.lt.s32.totalorder %s17, 1
      %s1390 = scalar_select %p1389, %s17, 1
      %s1391 = smul.addr %s1390, 8
      %s1392 = scalar_lea.vmem %s5, %s1391
      // Predicated region
      $region33: #{_conv_block_impl.2} parent=31 // pred_check
        %p1393 = pneg %p103
      $region34: #{_conv_block_impl.2} parent=31 // pred_check_branch
        %1395 = sbr.rel (%p1393) target = $region36
      $region35: #{_conv_block_impl.2} parent=31 // pred_region
        _
      $region36: #{_conv_block_impl.2} parent=31 // pred_fallthru
        _
      // Predicated region
      $region37: #{_conv_block_impl.2} parent=31 // pred_check
        %p1396 = pneg %p129
      $region38: #{_conv_block_impl.2} parent=31 // pred_check_branch
        %1398 = sbr.rel (%p1396) target = $region40
      $region39: #{_conv_block_impl.2} parent=31 // pred_region
        _
      $region40: #{_conv_block_impl.2} parent=31 // pred_fallthru
        _
      // Predicated region
      $region41: #{_conv_block_impl.2} parent=31 // pred_check
        %p1399 = pneg %p155
      $region42: #{_conv_block_impl.2} parent=31 // pred_check_branch
        %1401 = sbr.rel (%p1399) target = $region44
      $region43: #{_conv_block_impl.2} parent=31 // pred_region
        _
      $region44: #{_conv_block_impl.2} parent=31 // pred_fallthru
        _
    $region32: #{_conv_block_impl.2} parent=5 // pred_fallthru
      _
    %p1402 = scmp.le.s32.totalorder 2, %s12
    // Predicated region
    $region45: #{_conv_block_impl.2} parent=5 // pred_check
      %p1403 = pneg %p1402
    $region46: #{_conv_block_impl.2} parent=5 // pred_check_branch
      %1405 = sbr.rel (%p1403) target = $region48
    $region47: #{_conv_block_impl.2} parent=5 // pred_region
      %s1406 = ssub.s32 %s12, 2
      // Predicated region
      $region49: #{_conv_block_impl.2} parent=47 // pred_check
        %p1407 = pneg %p109
      $region50: #{_conv_block_impl.2} parent=47 // pred_check_branch
        %1409 = sbr.rel (%p1407) target = $region52
      $region51: #{_conv_block_impl.2} parent=47 // pred_region
        %p1410 = scmp.lt.s32.totalorder %s18, 1
        %s1411 = scalar_select %p1410, %s18, 1
        %s1412 = smul.addr %s1411, 3
        %s1413 = smul.addr %s1412, 8
        %s1414 = scalar_lea.vmem %s3, %s1413
      $region52: #{_conv_block_impl.2} parent=47 // pred_fallthru
        _
      // Predicated region
      $region53: #{_conv_block_impl.2} parent=47 // pred_check
        %p1415 = pneg %p135
      $region54: #{_conv_block_impl.2} parent=47 // pred_check_branch
        %1417 = sbr.rel (%p1415) target = $region56
      $region55: #{_conv_block_impl.2} parent=47 // pred_region
        %p1418 = scmp.lt.s32.totalorder %s18, 1
        %s1419 = scalar_select %p1418, %s18, 1
        %s1420 = smul.addr %s1419, 8
        %s1421 = scalar_lea.vmem %s4, %s1420
      $region56: #{_conv_block_impl.2} parent=47 // pred_fallthru
        _
      // Predicated region
      $region57: #{_conv_block_impl.2} parent=47 // pred_check
        %p1422 = pneg %p161
      $region58: #{_conv_block_impl.2} parent=47 // pred_check_branch
        %1424 = sbr.rel (%p1422) target = $region60
      $region59: #{_conv_block_impl.2} parent=47 // pred_region
        %p1425 = scmp.lt.s32.totalorder %s18, 1
        %s1426 = scalar_select %p1425, %s18, 1
        %s1427 = smul.addr %s1426, 8
        %s1428 = scalar_lea.vmem %s5, %s1427
      $region60: #{_conv_block_impl.2} parent=47 // pred_fallthru
        _
    $region48: #{_conv_block_impl.2} parent=5 // pred_fallthru
      _
  $region6: #{_conv_block_impl.2} parent=0 // loop_footer
    %s16 = sadd.s32 1, %s12
  $region7: #{_conv_block_impl.2} parent=0 // loop_footer_branch
    %11 = sbr.rel target = $region3
  $region8: #{_conv_block_impl.2} parent=0 // loop_exit
    _

</llo_original>
